<compile_context>
chip_gen: v7x
topology: tpu7x:2x2x1
jax: 0.10.0
libtpu: 0.0.40
codegen_flags: <defaults>
</compile_context>

<pallas_src>
import functools

import jax
import jax.numpy as jnp
from jax import lax
from jax.experimental import pallas as pl
from jax.experimental.pallas import tpu as pltpu


def _idq_kernel(mu_r_ref, mu_c_ref, labc_ref, labr_ref, pmc_ref, pmr_ref,
                cos_ref, tsoft_ref, rloss_ref, *, s, m, tm, tn, loss_type):
    i = pl.program_id(0)          # row block
    j = pl.program_id(1)          # col block (reduction axis for rloss)

    # ---- row-wise L2 normalization (F.normalize, p=2, dim=1) -------------
    def _l2_normalize(ref):
        x = ref[...].astype(jnp.float32)
        ss = jnp.sum(x * x, axis=-1, keepdims=True)
        inv = lax.rsqrt(jnp.maximum(ss, 1e-24))
        # keep matmul operands in the input dtype (bf16 stays bf16 -> MXU native)
        return (x * inv).astype(ref.dtype)

    mu_rn = _l2_normalize(mu_r_ref)                      # (TM, D)
    mu_cn = _l2_normalize(mu_c_ref)                      # (TN, D)

    # ---- cosine similarity tile: mu_rn @ mu_cn^T (contract D) ------------
    cos = lax.dot_general(mu_rn, mu_cn,
                          dimension_numbers=(((1,), (1,)), ((), ())),
                          preferred_element_type=jnp.float32)   # (TM, TN)

    # ---- soft / hard target (s*m folded) ----------------------------------
    if 'hard' in loss_type:
        t_soft = (cos > m).astype(jnp.float32)
    else:
        t_soft = jax.nn.sigmoid(s * cos - s * m)

    cos_ref[...] = cos
    tsoft_ref[...] = t_soft

    # ---- p_fuse in log domain from O(TM+TN) vectors ------------------------
    #   log(min(a_i, b_j))     = min(log a_i, log b_j)
    #   log(1 - min(a_i, b_j)) = max(log(1-a_i), log(1-b_j))
    eps = 1e-7   # clamp so log stays finite (PyTorch would emit -inf at 0/1)
    pm_c = jnp.clip(pmc_ref[...].astype(jnp.float32), eps, 1.0 - eps)   # (TM,1)
    pm_r = jnp.clip(pmr_ref[...].astype(jnp.float32), eps, 1.0 - eps)   # (1,TN)
    logp = jnp.minimum(jnp.log(pm_c), jnp.log(pm_r))                 # (TM,TN)
    log1mp = jnp.maximum(jnp.log(1.0 - pm_c), jnp.log(1.0 - pm_r))   # (TM,TN)

    ce = -t_soft * logp - (1.0 - t_soft) * log1mp

    # ---- positive-pair mask: same label, off the *global* diagonal --------
    same_label = labc_ref[...] == labr_ref[...]                      # (TM,TN)
    row_g = i * tm + lax.broadcasted_iota(jnp.int32, (tm, tn), 0)
    col_g = j * tn + lax.broadcasted_iota(jnp.int32, (tm, tn), 1)
    pos = jnp.logical_and(same_label, row_g != col_g)

    partial = jnp.sum(jnp.where(pos, ce, 0.0), axis=-1, keepdims=True)  # (TM,1)

    # per-row masked-CE accumulator, resident across the col-block axis
    @pl.when(j == 0)
    def _():
        rloss_ref[...] = jnp.zeros_like(rloss_ref)
    rloss_ref[...] += partial


def _round_up(x, n):
    return ((x + n - 1) // n) * n


def _pick_tile(bp, candidates, d, budget_bytes=4 << 20):
    for t in candidates:
        if bp % t == 0 and t * max(d, 1) * 4 <= budget_bytes:
            return t
    return 128


def idq_loss(mu_X, p_X, label, *, s=16.0, m=0.4, loss_type='soft'):
    """Returns (ce_loss_pos, end_points).

    end_points contains full (B,B) 'cos' / 't_soft' matrices plus 'pos_mask'
    instead of PyTorch's dynamically-shaped boolean-indexed vectors.
    """
    B, D = mu_X.shape
    # TODO(synk): the K==0 branch of the PyTorch module is degenerate (broadcast
    # of (B,0) with (0,B)); require K >= 1 here.
    assert p_X.shape[-1] > 0

    # pconf = mean(1 - p_X, -1): trivially cheap in XLA; the kernel then only
    # reads O(B) extra data instead of p_X / p_X^T.
    pconf = jnp.mean(1.0 - p_X.astype(jnp.float32), axis=-1, keepdims=True)  # (B,1)

    lab = label.astype(jnp.int32).reshape(B)

    # Pad B up to a multiple of 128 so (B,B) outputs are lane-dense and MXU
    # tiles are full.  Padded rows get unique labels -> never positive pairs
    # -> contribute exactly 0 to the loss.
    Bp = max(_round_up(B, 128), 128)
    pad = Bp - B
    mu_p = jnp.pad(mu_X, ((0, pad), (0, 0)))
    pad_labels = lab.max() + 1 + jnp.arange(pad, dtype=jnp.int32)
    lab_p = jnp.concatenate([lab, pad_labels], axis=0)
    pconf_p = jnp.pad(pconf, ((0, pad), (0, 0)), constant_values=0.5)

    lab_col = lab_p.reshape(Bp, 1)
    lab_row = lab_p.reshape(1, Bp)
    pm_col = pconf_p.reshape(Bp, 1)
    pm_row = pconf_p.reshape(1, Bp)

    tm = _pick_tile(Bp, (256, 128), D)
    tn = _pick_tile(Bp, (1024, 512, 256, 128), D)
    grid = (Bp // tm, Bp // tn)

    kernel = functools.partial(_idq_kernel, s=float(s), m=float(m),
                               tm=tm, tn=tn, loss_type=loss_type)

    cos_p, tsoft_p, rloss_p = pl.pallas_call(
        kernel,
        grid=grid,
        in_specs=[
            pl.BlockSpec((tm, D), lambda i, j: (i, 0)),   # mu, row-panel role
            pl.BlockSpec((tn, D), lambda i, j: (j, 0)),   # mu, col-panel role
            pl.BlockSpec((tm, 1), lambda i, j: (i, 0)),   # labels (column form)
            pl.BlockSpec((1, tn), lambda i, j: (0, j)),   # labels (row form)
            pl.BlockSpec((tm, 1), lambda i, j: (i, 0)),   # pconf (column form)
            pl.BlockSpec((1, tn), lambda i, j: (0, j)),   # pconf (row form)
        ],
        out_specs=(
            pl.BlockSpec((tm, tn), lambda i, j: (i, j)),  # cos tile
            pl.BlockSpec((tm, tn), lambda i, j: (i, j)),  # t_soft tile
            pl.BlockSpec((tm, 1), lambda i, j: (i, 0)),   # per-row masked CE sum
        ),
        out_shape=(
            jax.ShapeDtypeStruct((Bp, Bp), jnp.float32),
            jax.ShapeDtypeStruct((Bp, Bp), jnp.float32),
            jax.ShapeDtypeStruct((Bp, 1), jnp.float32),
        ),
        compiler_params=pltpu.CompilerParams(
            dimension_semantics=("parallel", "arbitrary")),
    )(mu_p, mu_p, lab_col, lab_row, pm_col, pm_row)

    cos = cos_p[:B, :B]
    t_soft = tsoft_p[:B, :B]

    # pos_mask depends only on labels -> recompute in XLA (cheap), used for
    # the final mean's denominator and returned for masked indexing outside.
    pos_mask = jnp.logical_and(lab[:, None] == lab[None, :],
                               ~jnp.eye(B, dtype=bool))
    count = jnp.sum(pos_mask.astype(jnp.float32))
    # Guard count==0 (PyTorch would yield NaN for a batch with no positives).
    loss = jnp.sum(rloss_p[:B, 0]) / jnp.maximum(count, 1.0)

    end_points = {
        'pconf': pconf,         # (B, 1)
        'cos': cos,             # full (B, B); PyTorch returns cos[pos_mask]
        't_soft': t_soft,       # full (B, B); PyTorch returns t_soft[pos_mask]
        'pos_mask': pos_mask,   # (B, B) bool, use to recover masked values
    }
    return loss, end_points


def _idq_loss_ref(mu_X, p_X, label, *, s=16.0, m=0.4, loss_type='soft'):
    """Pure-JAX reference matching the PyTorch forward."""
    p = 1.0 - p_X
    norm = jnp.sqrt(jnp.sum(mu_X * mu_X, axis=1, keepdims=True))
    mu_n = mu_X / jnp.maximum(norm, 1e-12)
    cos = mu_n @ mu_n.T
    B = mu_X.shape[0]
    pos = (label[:, None] == label[None, :]) & (~jnp.eye(B, dtype=bool))
    if 'hard' in loss_type:
        t = (cos > m).astype(jnp.float32)
    else:
        t = jax.nn.sigmoid(s * (cos - m))
    pm = jnp.mean(p, axis=-1, keepdims=True)
    p_fuse = jnp.minimum(pm, pm.T)
    ce = -t * jnp.log(p_fuse) - (1.0 - t) * jnp.log(1.0 - p_fuse)
    return jnp.sum(jnp.where(pos, ce, 0.0)) / jnp.sum(pos)


if __name__ == "__main__":
    key = jax.random.PRNGKey(0)
    k1, k2 = jax.random.split(key)

    B, D, K = 8, 32, 4
    mu_X = jax.random.normal(k1, (B, D), dtype=jnp.float32)
    p_X = jax.random.uniform(k2, (B, K), dtype=jnp.float32,
                             minval=0.05, maxval=0.95)
    # deterministic labels with guaranteed positive (same-label) pairs
    label = jnp.array([0, 0, 1, 1, 2, 2, 3, 3], dtype=jnp.int32)

    loss, end_points = idq_loss(mu_X, p_X, label, s=16.0, m=0.4,
                                loss_type='soft')
    loss = jax.block_until_ready(loss)
    jax.block_until_ready(end_points)

    ref = jax.block_until_ready(
        _idq_loss_ref(mu_X, p_X, label, s=16.0, m=0.4, loss_type='soft'))

    assert bool(jnp.isfinite(loss)), "loss is not finite"
    assert bool(jnp.abs(loss - ref) <= 1e-2 + 1e-2 * jnp.abs(ref)), \
        f"loss mismatch: kernel={float(loss)} ref={float(ref)}"
    print("KERNEL_OK")
</pallas_src>

<mosaic_0001>
module attributes {stable_mosaic.version = 11 : i64} {
  func.func @_idq_kernel(%arg0: i32, %arg1: i32, %arg2: memref<128x32xf32, #tpu.memory_space<vmem>>, %arg3: memref<128x32xf32, #tpu.memory_space<vmem>>, %arg4: memref<128x1xi32, #tpu.memory_space<vmem>>, %arg5: memref<1x128xi32, #tpu.memory_space<vmem>>, %arg6: memref<128x1xf32, #tpu.memory_space<vmem>>, %arg7: memref<1x128xf32, #tpu.memory_space<vmem>>, %arg8: memref<128x128xf32, #tpu.memory_space<vmem>>, %arg9: memref<128x128xf32, #tpu.memory_space<vmem>>, %arg10: memref<128x1xf32, #tpu.memory_space<vmem>>) attributes {dimension_semantics = [#tpu.dimension_semantics<parallel>, #tpu.dimension_semantics<arbitrary>], iteration_bounds = array<i64: 1, 1>, scalar_prefetch = 0 : i64, scratch_operands = 0 : i64, tpu.core_type = #tpu.core_type<tc>, window_params = [{transform_indices = @transform_0, window_bounds = array<i64: 128, 32>}, {transform_indices = @transform_1, window_bounds = array<i64: 128, 32>}, {transform_indices = @transform_2, window_bounds = array<i64: 128, 1>}, {transform_indices = @transform_3, window_bounds = array<i64: 1, 128>}, {transform_indices = @transform_4, window_bounds = array<i64: 128, 1>}, {transform_indices = @transform_5, window_bounds = array<i64: 1, 128>}, {transform_indices = @transform_6, window_bounds = array<i64: 128, 128>}, {transform_indices = @transform_7, window_bounds = array<i64: 128, 128>}, {transform_indices = @transform_8, window_bounds = array<i64: 128, 1>}]} {
    %c0 = arith.constant 0 : index
    %c0_0 = arith.constant 0 : index
    %0 = vector.load %arg2[%c0, %c0_0] : memref<128x32xf32, #tpu.memory_space<vmem>>, vector<128x32xf32>
    %1 = arith.mulf %0, %0 : vector<128x32xf32>
    %cst = arith.constant dense<0.000000e+00> : vector<128xf32>
    %2 = vector.multi_reduction <add>, %1, %cst [1] : vector<128x32xf32> to vector<128xf32>
    %3 = vector.shape_cast %2 : vector<128xf32> to vector<128x1xf32>
    %cst_1 = arith.constant 1.000000e-24 : f32
    %4 = vector.broadcast %cst_1 : f32 to vector<128x1xf32>
    %5 = arith.maximumf %3, %4 : vector<128x1xf32>
    %6 = math.rsqrt %5 : vector<128x1xf32>
    %7 = vector.broadcast %6 : vector<128x1xf32> to vector<128x32xf32>
    %8 = arith.mulf %0, %7 : vector<128x32xf32>
    %c0_2 = arith.constant 0 : index
    %c0_3 = arith.constant 0 : index
    %9 = vector.load %arg3[%c0_2, %c0_3] : memref<128x32xf32, #tpu.memory_space<vmem>>, vector<128x32xf32>
    %10 = arith.mulf %9, %9 : vector<128x32xf32>
    %cst_4 = arith.constant dense<0.000000e+00> : vector<128xf32>
    %11 = vector.multi_reduction <add>, %10, %cst_4 [1] : vector<128x32xf32> to vector<128xf32>
    %12 = vector.shape_cast %11 : vector<128xf32> to vector<128x1xf32>
    %cst_5 = arith.constant 1.000000e-24 : f32
    %13 = vector.broadcast %cst_5 : f32 to vector<128x1xf32>
    %14 = arith.maximumf %12, %13 : vector<128x1xf32>
    %15 = math.rsqrt %14 : vector<128x1xf32>
    %16 = vector.broadcast %15 : vector<128x1xf32> to vector<128x32xf32>
    %17 = arith.mulf %9, %16 : vector<128x32xf32>
    %cst_6 = arith.constant dense<0.000000e+00> : vector<128x128xf32>
    %18 = tpu.matmul %8, %17, %cst_6 {dimension_numbers = #tpu.dot_dimension_numbers<[1], [1], [0], [0], [0, 0, 1, 0], [], []>} : vector<128x32xf32>, vector<128x32xf32>, vector<128x128xf32> -> vector<128x128xf32>
    %cst_7 = arith.constant 1.600000e+01 : f32
    %19 = vector.broadcast %cst_7 : f32 to vector<128x128xf32>
    %20 = arith.mulf %19, %18 : vector<128x128xf32>
    %cst_8 = arith.constant 6.400000e+00 : f32
    %21 = vector.broadcast %cst_8 : f32 to vector<128x128xf32>
    %22 = arith.subf %20, %21 : vector<128x128xf32>
    %23 = arith.negf %22 : vector<128x128xf32>
    %24 = math.exp %23 : vector<128x128xf32>
    %cst_9 = arith.constant 1.000000e+00 : f32
    %25 = vector.broadcast %cst_9 : f32 to vector<128x128xf32>
    %26 = arith.addf %25, %24 : vector<128x128xf32>
    %27 = arith.divf %25, %26 : vector<128x128xf32>
    %c0_10 = arith.constant 0 : index
    %c0_11 = arith.constant 0 : index
    %28 = vector.load %arg8[%c0_10, %c0_11] : memref<128x128xf32, #tpu.memory_space<vmem>>, vector<128x128xf32>
    tpu.vector_store %arg8[%c0_10, %c0_11], %18 {strides = array<i32>} : memref<128x128xf32, #tpu.memory_space<vmem>>, vector<128x128xf32>,
    %c0_12 = arith.constant 0 : index
    %c0_13 = arith.constant 0 : index
    %29 = vector.load %arg9[%c0_12, %c0_13] : memref<128x128xf32, #tpu.memory_space<vmem>>, vector<128x128xf32>
    tpu.vector_store %arg9[%c0_12, %c0_13], %27 {strides = array<i32>} : memref<128x128xf32, #tpu.memory_space<vmem>>, vector<128x128xf32>,
    %c0_14 = arith.constant 0 : index
    %c0_15 = arith.constant 0 : index
    %30 = vector.load %arg6[%c0_14, %c0_15] : memref<128x1xf32, #tpu.memory_space<vmem>>, vector<128x1xf32>
    %cst_16 = arith.constant 1.000000e-07 : f32
    %cst_17 = arith.constant 0.99999988 : f32
    %31 = vector.broadcast %cst_16 : f32 to vector<128x1xf32>
    %32 = arith.maximumf %31, %30 : vector<128x1xf32>
    %33 = vector.broadcast %cst_17 : f32 to vector<128x1xf32>
    %34 = arith.minimumf %33, %32 : vector<128x1xf32>
    %c0_18 = arith.constant 0 : index
    %c0_19 = arith.constant 0 : index
    %35 = vector.load %arg7[%c0_18, %c0_19] : memref<1x128xf32, #tpu.memory_space<vmem>>, vector<1x128xf32>
    %cst_20 = arith.constant 1.000000e-07 : f32
    %cst_21 = arith.constant 0.99999988 : f32
    %36 = vector.broadcast %cst_20 : f32 to vector<1x128xf32>
    %37 = arith.maximumf %36, %35 : vector<1x128xf32>
    %38 = vector.broadcast %cst_21 : f32 to vector<1x128xf32>
    %39 = arith.minimumf %38, %37 : vector<1x128xf32>
    %40 = math.log %34 : vector<128x1xf32>
    %41 = math.log %39 : vector<1x128xf32>
    %42 = vector.broadcast %40 : vector<128x1xf32> to vector<128x128xf32>
    %43 = vector.broadcast %41 : vector<1x128xf32> to vector<128x128xf32>
    %44 = arith.minimumf %42, %43 : vector<128x128xf32>
    %cst_22 = arith.constant 1.000000e+00 : f32
    %45 = vector.broadcast %cst_22 : f32 to vector<128x1xf32>
    %46 = arith.subf %45, %34 : vector<128x1xf32>
    %47 = math.log %46 : vector<128x1xf32>
    %cst_23 = arith.constant 1.000000e+00 : f32
    %48 = vector.broadcast %cst_23 : f32 to vector<1x128xf32>
    %49 = arith.subf %48, %39 : vector<1x128xf32>
    %50 = math.log %49 : vector<1x128xf32>
    %51 = vector.broadcast %47 : vector<128x1xf32> to vector<128x128xf32>
    %52 = vector.broadcast %50 : vector<1x128xf32> to vector<128x128xf32>
    %53 = arith.maximumf %51, %52 : vector<128x128xf32>
    %cst_24 = arith.constant 0.000000e+00 : f32
    %54 = vector.broadcast %cst_24 : f32 to vector<128x128xf32>
    %55 = arith.subf %54, %27 : vector<128x128xf32>
    %56 = arith.mulf %55, %44 : vector<128x128xf32>
    %cst_25 = arith.constant 1.000000e+00 : f32
    %57 = vector.broadcast %cst_25 : f32 to vector<128x128xf32>
    %58 = arith.subf %57, %27 : vector<128x128xf32>
    %59 = arith.mulf %58, %53 : vector<128x128xf32>
    %60 = arith.subf %56, %59 : vector<128x128xf32>
    %c0_26 = arith.constant 0 : index
    %c0_27 = arith.constant 0 : index
    %61 = vector.load %arg4[%c0_26, %c0_27] : memref<128x1xi32, #tpu.memory_space<vmem>>, vector<128x1xi32>
    %c0_28 = arith.constant 0 : index
    %c0_29 = arith.constant 0 : index
    %62 = vector.load %arg5[%c0_28, %c0_29] : memref<1x128xi32, #tpu.memory_space<vmem>>, vector<1x128xi32>
    %63 = vector.broadcast %61 : vector<128x1xi32> to vector<128x128xi32>
    %64 = vector.broadcast %62 : vector<1x128xi32> to vector<128x128xi32>
    %65 = arith.cmpi eq, %63, %64 : vector<128x128xi32>
    %c128_i32 = arith.constant 128 : i32
    %66 = arith.muli %arg0, %c128_i32 : i32
    %67 = tpu.iota {dimensions = array<i32: 0>} : vector<128x128xi32>
    %68 = vector.broadcast %66 : i32 to vector<128x128xi32>
    %69 = arith.addi %68, %67 : vector<128x128xi32>
    %c128_i32_30 = arith.constant 128 : i32
    %70 = arith.muli %arg1, %c128_i32_30 : i32
    %71 = tpu.iota {dimensions = array<i32: 1>} : vector<128x128xi32>
    %72 = vector.broadcast %70 : i32 to vector<128x128xi32>
    %73 = arith.addi %72, %71 : vector<128x128xi32>
    %74 = arith.cmpi ne, %69, %73 : vector<128x128xi32>
    %75 = arith.andi %65, %74 : vector<128x128xi1>
    %cst_31 = arith.constant 0.000000e+00 : f32
    %76 = vector.broadcast %cst_31 : f32 to vector<128x128xf32>
    %77 = arith.select %75, %60, %76 : vector<128x128xi1>, vector<128x128xf32>
    %cst_32 = arith.constant dense<0.000000e+00> : vector<128xf32>
    %78 = vector.multi_reduction <add>, %77, %cst_32 [1] : vector<128x128xf32> to vector<128xf32>
    %79 = vector.shape_cast %78 : vector<128xf32> to vector<128x1xf32>
    %c0_i32 = arith.constant 0 : i32
    %80 = arith.cmpi eq, %arg1, %c0_i32 : i32
    %81 = arith.extui %80 : i1 to i32
    %c0_i32_33 = arith.constant 0 : i32
    %82 = arith.cmpi ne, %81, %c0_i32_33 : i32
    scf.if %82 {
      %cst_38 = arith.constant 0.000000e+00 : f32
      %86 = vector.broadcast %cst_38 : f32 to vector<128x1xf32>
      %c0_39 = arith.constant 0 : index
      %c0_40 = arith.constant 0 : index
      %87 = vector.load %arg10[%c0_39, %c0_40] : memref<128x1xf32, #tpu.memory_space<vmem>>, vector<128x1xf32>
      tpu.vector_store %arg10[%c0_39, %c0_40], %86 {strides = array<i32>} : memref<128x1xf32, #tpu.memory_space<vmem>>, vector<128x1xf32>,
    } else {
    }
    %c0_34 = arith.constant 0 : index
    %c0_35 = arith.constant 0 : index
    %83 = vector.load %arg10[%c0_34, %c0_35] : memref<128x1xf32, #tpu.memory_space<vmem>>, vector<128x1xf32>
    %84 = arith.addf %83, %79 : vector<128x1xf32>
    %c0_36 = arith.constant 0 : index
    %c0_37 = arith.constant 0 : index
    %85 = vector.load %arg10[%c0_36, %c0_37] : memref<128x1xf32, #tpu.memory_space<vmem>>, vector<128x1xf32>
    tpu.vector_store %arg10[%c0_36, %c0_37], %84 {strides = array<i32>} : memref<128x1xf32, #tpu.memory_space<vmem>>, vector<128x1xf32>,
    return
  }
  func.func @transform_0(%arg0: i32, %arg1: i32) -> (i32, i32) {
    %c0_i32 = arith.constant 0 : i32
    %c0_i32_0 = arith.constant 0 : i32
    return %arg0, %c0_i32 : i32, i32
  }
  func.func @transform_1(%arg0: i32, %arg1: i32) -> (i32, i32) {
    %c0_i32 = arith.constant 0 : i32
    %c0_i32_0 = arith.constant 0 : i32
    return %arg1, %c0_i32 : i32, i32
  }
  func.func @transform_2(%arg0: i32, %arg1: i32) -> (i32, i32) {
    %c0_i32 = arith.constant 0 : i32
    %c0_i32_0 = arith.constant 0 : i32
    return %arg0, %c0_i32 : i32, i32
  }
  func.func @transform_3(%arg0: i32, %arg1: i32) -> (i32, i32) {
    %c0_i32 = arith.constant 0 : i32
    %c0_i32_0 = arith.constant 0 : i32
    return %c0_i32, %arg1 : i32, i32
  }
  func.func @transform_4(%arg0: i32, %arg1: i32) -> (i32, i32) {
    %c0_i32 = arith.constant 0 : i32
    %c0_i32_0 = arith.constant 0 : i32
    return %arg0, %c0_i32 : i32, i32
  }
  func.func @transform_5(%arg0: i32, %arg1: i32) -> (i32, i32) {
    %c0_i32 = arith.constant 0 : i32
    %c0_i32_0 = arith.constant 0 : i32
    return %c0_i32, %arg1 : i32, i32
  }
  func.func @transform_6(%arg0: i32, %arg1: i32) -> (i32, i32) {
    %c0_i32 = arith.constant 0 : i32
    return %arg0, %arg1 : i32, i32
  }
  func.func @transform_7(%arg0: i32, %arg1: i32) -> (i32, i32) {
    %c0_i32 = arith.constant 0 : i32
    return %arg0, %arg1 : i32, i32
  }
  func.func @transform_8(%arg0: i32, %arg1: i32) -> (i32, i32) {
    %c0_i32 = arith.constant 0 : i32
    %c0_i32_0 = arith.constant 0 : i32
    return %arg0, %c0_i32 : i32, i32
  }
}

</mosaic_0001>

<llo_original>
// kernel: tpu_custom_call.1
$region0: #{tpu_custom_call.1}
  #allocation0 [shape = 'u32[]', space=smem, size = 0x4, offset = 0x4, fixed_abs, tag = 'smem constant byte address 0x4 - core index']
  #allocation1 [shape = 'u32[144,128]{1,0:T(1,128)}', space=vmem, size = 0x12000, scoped, tag = 'internal scratch']
  %s0 = inlined_call_operand.vmem [shape: f32[128,32], index: 0, kind: input, shape index: {}]
  %s1 = inlined_call_operand.vmem [shape: f32[128,32], index: 1, kind: input, shape index: {}]
  %s2 = inlined_call_operand.vmem [shape: s32[128,1], index: 2, kind: input, shape index: {}]
  %s3 = inlined_call_operand.vmem [shape: s32[1,128], index: 3, kind: input, shape index: {}]
  %s4 = inlined_call_operand.vmem [shape: f32[128,1], index: 4, kind: input, shape index: {}]
  %s5 = inlined_call_operand.vmem [shape: f32[1,128], index: 5, kind: input, shape index: {}]
  %s6 = inlined_call_operand.hbm [shape: f32[128,128], index: 6, kind: output, shape index: {0}]
  %s7 = inlined_call_operand.hbm [shape: f32[128,128], index: 7, kind: output, shape index: {1}]
  %s8 = inlined_call_operand.vmem [shape: f32[128,1], index: 8, kind: output, shape index: {2}]
  %9 = xla_tuple %s6, %s7, %s8
  %s10 = sld [smem:[#allocation0]]
  $region54: #{tpu_custom_call.1} parent=0
    _
  %s12 = ssub.s32 1, %s10
  %s13 = scalar_select 0, %s12, %s10
  $region1: #{tpu_custom_call.1} parent=0
    #allocation2 [shape = 'u8[65536]{0}', space=vmem, size = 0x10000, scoped, tag = 'output window, operand 0, single buffered']
    #allocation3 [shape = 's32[1]{0}', space=sflag, size = 0x4, scoped, tag = 'scoped memory for tpu_custom_call.1']
    #allocation4 [shape = 'u8[65536]{0}', space=vmem, size = 0x10000, scoped, tag = 'output window, operand 1, single buffered']
    #allocation5 [shape = 's32[1]{0}', space=sflag, size = 0x4, scoped, tag = 'scoped memory for tpu_custom_call.1']
    %14 = vsyncpa [#allocation3], 0
    %15 = vsyncpa [#allocation5], 0
    // Predicated region
    $region2: #{tpu_custom_call.1} parent=1 // pred_check
      _
    $region3: #{tpu_custom_call.1} parent=1 // pred_check_branch
      %17 = sbr.rel (0) target = $region5
    $region4: #{tpu_custom_call.1} parent=1 // pred_region
      _
    $region5: #{tpu_custom_call.1} parent=1 // pred_fallthru
      _
    // Predicated region
    $region6: #{tpu_custom_call.1} parent=1 // pred_check
      _
    $region7: #{tpu_custom_call.1} parent=1 // pred_check_branch
      %19 = sbr.rel (0) target = $region9
    $region8: #{tpu_custom_call.1} parent=1 // pred_region
      _
    $region9: #{tpu_custom_call.1} parent=1 // pred_fallthru
      _
    // Predicated region
    $region10: #{tpu_custom_call.1} parent=1 // pred_check
      _
    $region11: #{tpu_custom_call.1} parent=1 // pred_check_branch
      %21 = sbr.rel (0) target = $region13
    $region12: #{tpu_custom_call.1} parent=1 // pred_region
      _
    $region13: #{tpu_custom_call.1} parent=1 // pred_fallthru
      _
    // Predicated region
    $region14: #{tpu_custom_call.1} parent=1 // pred_check
      _
    $region15: #{tpu_custom_call.1} parent=1 // pred_check_branch
      %23 = sbr.rel (0) target = $region17
    $region16: #{tpu_custom_call.1} parent=1 // pred_region
      _
    $region17: #{tpu_custom_call.1} parent=1 // pred_fallthru
      _
    // Predicated region
    $region18: #{tpu_custom_call.1} parent=1 // pred_check
      _
    $region19: #{tpu_custom_call.1} parent=1 // pred_check_branch
      %25 = sbr.rel (0) target = $region21
    $region20: #{tpu_custom_call.1} parent=1 // pred_region
      _
    $region21: #{tpu_custom_call.1} parent=1 // pred_fallthru
      _
    // Predicated region
    $region22: #{tpu_custom_call.1} parent=1 // pred_check
      _
    $region23: #{tpu_custom_call.1} parent=1 // pred_check_branch
      %27 = sbr.rel (0) target = $region25
    $region24: #{tpu_custom_call.1} parent=1 // pred_region
      _
    $region25: #{tpu_custom_call.1} parent=1 // pred_fallthru
      _
    %v28 = vld [vmem:[%s0] sm:$0xff]
    %v29 = vld [vmem:[%s0 + $0x8] sm:$0xff]
    %v30 = vld [vmem:[%s0 + $0x10] sm:$0xff]
    %v31 = vld [vmem:[%s0 + $0x18] sm:$0xff]
    %v32 = vld [vmem:[%s0 + $0x20] sm:$0xff]
    %v33 = vld [vmem:[%s0 + $0x28] sm:$0xff]
    %v34 = vld [vmem:[%s0 + $0x30] sm:$0xff]
    %v35 = vld [vmem:[%s0 + $0x38] sm:$0xff]
    %v36 = vld [vmem:[%s0 + $0x40] sm:$0xff]
    %v37 = vld [vmem:[%s0 + $0x48] sm:$0xff]
    %v38 = vld [vmem:[%s0 + $0x50] sm:$0xff]
    %v39 = vld [vmem:[%s0 + $0x58] sm:$0xff]
    %v40 = vld [vmem:[%s0 + $0x60] sm:$0xff]
    %v41 = vld [vmem:[%s0 + $0x68] sm:$0xff]
    %v42 = vld [vmem:[%s0 + $0x70] sm:$0xff]
    %v43 = vld [vmem:[%s0 + $0x78] sm:$0xff]
    %v44 = vmul.f32 %v28, %v28
    %v45 = vmul.f32 %v29, %v29
    %v46 = vmul.f32 %v30, %v30
    %v47 = vmul.f32 %v31, %v31
    %v48 = vmul.f32 %v32, %v32
    %v49 = vmul.f32 %v33, %v33
    %v50 = vmul.f32 %v34, %v34
    %v51 = vmul.f32 %v35, %v35
    %v52 = vmul.f32 %v36, %v36
    %v53 = vmul.f32 %v37, %v37
    %v54 = vmul.f32 %v38, %v38
    %v55 = vmul.f32 %v39, %v39
    %v56 = vmul.f32 %v40, %v40
    %v57 = vmul.f32 %v41, %v41
    %v58 = vmul.f32 %v42, %v42
    %v59 = vmul.f32 %v43, %v43
    %vm60 = vcmask 261120
    %v61 = vsel %vm60, %v44, 0.0
    %62 = vadd.xlane.f32.xlu0 %v61
    %v63 = vpop.xlane.xlu0 %62
    %v64 = vsel %vm60, %v45, 0.0
    %65 = vadd.xlane.f32.xlu0 %v64
    %v66 = vpop.xlane.xlu0 %65
    %v67 = vsel %vm60, %v46, 0.0
    %68 = vadd.xlane.f32.xlu0 %v67
    %v69 = vpop.xlane.xlu0 %68
    %v70 = vsel %vm60, %v47, 0.0
    %71 = vadd.xlane.f32.xlu0 %v70
    %v72 = vpop.xlane.xlu0 %71
    %v73 = vsel %vm60, %v48, 0.0
    %74 = vadd.xlane.f32.xlu0 %v73
    %v75 = vpop.xlane.xlu0 %74
    %v76 = vsel %vm60, %v49, 0.0
    %77 = vadd.xlane.f32.xlu0 %v76
    %v78 = vpop.xlane.xlu0 %77
    %v79 = vsel %vm60, %v50, 0.0
    %80 = vadd.xlane.f32.xlu0 %v79
    %v81 = vpop.xlane.xlu0 %80
    %v82 = vsel %vm60, %v51, 0.0
    %83 = vadd.xlane.f32.xlu0 %v82
    %v84 = vpop.xlane.xlu0 %83
    %v85 = vsel %vm60, %v52, 0.0
    %86 = vadd.xlane.f32.xlu0 %v85
    %v87 = vpop.xlane.xlu0 %86
    %v88 = vsel %vm60, %v53, 0.0
    %89 = vadd.xlane.f32.xlu0 %v88
    %v90 = vpop.xlane.xlu0 %89
    %v91 = vsel %vm60, %v54, 0.0
    %92 = vadd.xlane.f32.xlu0 %v91
    %v93 = vpop.xlane.xlu0 %92
    %v94 = vsel %vm60, %v55, 0.0
    %95 = vadd.xlane.f32.xlu0 %v94
    %v96 = vpop.xlane.xlu0 %95
    %v97 = vsel %vm60, %v56, 0.0
    %98 = vadd.xlane.f32.xlu0 %v97
    %v99 = vpop.xlane.xlu0 %98
    %v100 = vsel %vm60, %v57, 0.0
    %101 = vadd.xlane.f32.xlu0 %v100
    %v102 = vpop.xlane.xlu0 %101
    %v103 = vsel %vm60, %v58, 0.0
    %104 = vadd.xlane.f32.xlu0 %v103
    %v105 = vpop.xlane.xlu0 %104
    %v106 = vsel %vm60, %v59, 0.0
    %107 = vadd.xlane.f32.xlu0 %v106
    %v108 = vpop.xlane.xlu0 %107
    %v109 = vmax.f32 %v63, 1e-24
    %v110 = vmax.f32 %v66, 1e-24
    %v111 = vmax.f32 %v69, 1e-24
    %v112 = vmax.f32 %v72, 1e-24
    %v113 = vmax.f32 %v75, 1e-24
    %v114 = vmax.f32 %v78, 1e-24
    %v115 = vmax.f32 %v81, 1e-24
    %v116 = vmax.f32 %v84, 1e-24
    %v117 = vmax.f32 %v87, 1e-24
    %v118 = vmax.f32 %v90, 1e-24
    %v119 = vmax.f32 %v93, 1e-24
    %v120 = vmax.f32 %v96, 1e-24
    %v121 = vmax.f32 %v99, 1e-24
    %v122 = vmax.f32 %v102, 1e-24
    %v123 = vmax.f32 %v105, 1e-24
    %v124 = vmax.f32 %v108, 1e-24
    %v125 = vrsqrt.pop %v109
    %v126 = vrsqrt.pop %v110
    %v127 = vrsqrt.pop %v111
    %v128 = vrsqrt.pop %v112
    %v129 = vrsqrt.pop %v113
    %v130 = vrsqrt.pop %v114
    %v131 = vrsqrt.pop %v115
    %v132 = vrsqrt.pop %v116
    %v133 = vrsqrt.pop %v117
    %v134 = vrsqrt.pop %v118
    %v135 = vrsqrt.pop %v119
    %v136 = vrsqrt.pop %v120
    %v137 = vrsqrt.pop %v121
    %v138 = vrsqrt.pop %v122
    %v139 = vrsqrt.pop %v123
    %v140 = vrsqrt.pop %v124
    %v141 = vmul.f32 %v28, %v125
    %v142 = vmul.f32 %v29, %v126
    %v143 = vmul.f32 %v30, %v127
    %v144 = vmul.f32 %v31, %v128
    %v145 = vmul.f32 %v32, %v129
    %v146 = vmul.f32 %v33, %v130
    %v147 = vmul.f32 %v34, %v131
    %v148 = vmul.f32 %v35, %v132
    %v149 = vmul.f32 %v36, %v133
    %v150 = vmul.f32 %v37, %v134
    %v151 = vmul.f32 %v38, %v135
    %v152 = vmul.f32 %v39, %v136
    %v153 = vmul.f32 %v40, %v137
    %v154 = vmul.f32 %v41, %v138
    %v155 = vmul.f32 %v42, %v139
    %v156 = vmul.f32 %v43, %v140
    %v157 = vld [vmem:[%s1] sm:$0xff]
    %v158 = vld [vmem:[%s1 + $0x8] sm:$0xff]
    %v159 = vld [vmem:[%s1 + $0x10] sm:$0xff]
    %v160 = vld [vmem:[%s1 + $0x18] sm:$0xff]
    %v161 = vld [vmem:[%s1 + $0x20] sm:$0xff]
    %v162 = vld [vmem:[%s1 + $0x28] sm:$0xff]
    %v163 = vld [vmem:[%s1 + $0x30] sm:$0xff]
    %v164 = vld [vmem:[%s1 + $0x38] sm:$0xff]
    %v165 = vld [vmem:[%s1 + $0x40] sm:$0xff]
    %v166 = vld [vmem:[%s1 + $0x48] sm:$0xff]
    %v167 = vld [vmem:[%s1 + $0x50] sm:$0xff]
    %v168 = vld [vmem:[%s1 + $0x58] sm:$0xff]
    %v169 = vld [vmem:[%s1 + $0x60] sm:$0xff]
    %v170 = vld [vmem:[%s1 + $0x68] sm:$0xff]
    %v171 = vld [vmem:[%s1 + $0x70] sm:$0xff]
    %v172 = vld [vmem:[%s1 + $0x78] sm:$0xff]
    %v173 = vmul.f32 %v157, %v157
    %v174 = vmul.f32 %v158, %v158
    %v175 = vmul.f32 %v159, %v159
    %v176 = vmul.f32 %v160, %v160
    %v177 = vmul.f32 %v161, %v161
    %v178 = vmul.f32 %v162, %v162
    %v179 = vmul.f32 %v163, %v163
    %v180 = vmul.f32 %v164, %v164
    %v181 = vmul.f32 %v165, %v165
    %v182 = vmul.f32 %v166, %v166
    %v183 = vmul.f32 %v167, %v167
    %v184 = vmul.f32 %v168, %v168
    %v185 = vmul.f32 %v169, %v169
    %v186 = vmul.f32 %v170, %v170
    %v187 = vmul.f32 %v171, %v171
    %v188 = vmul.f32 %v172, %v172
    %v189 = vsel %vm60, %v173, 0.0
    %190 = vadd.xlane.f32.xlu0 %v189
    %v191 = vpop.xlane.xlu0 %190
    %v192 = vsel %vm60, %v174, 0.0
    %193 = vadd.xlane.f32.xlu0 %v192
    %v194 = vpop.xlane.xlu0 %193
    %v195 = vsel %vm60, %v175, 0.0
    %196 = vadd.xlane.f32.xlu0 %v195
    %v197 = vpop.xlane.xlu0 %196
    %v198 = vsel %vm60, %v176, 0.0
    %199 = vadd.xlane.f32.xlu0 %v198
    %v200 = vpop.xlane.xlu0 %199
    %v201 = vsel %vm60, %v177, 0.0
    %202 = vadd.xlane.f32.xlu0 %v201
    %v203 = vpop.xlane.xlu0 %202
    %v204 = vsel %vm60, %v178, 0.0
    %205 = vadd.xlane.f32.xlu0 %v204
    %v206 = vpop.xlane.xlu0 %205
    %v207 = vsel %vm60, %v179, 0.0
    %208 = vadd.xlane.f32.xlu0 %v207
    %v209 = vpop.xlane.xlu0 %208
    %v210 = vsel %vm60, %v180, 0.0
    %211 = vadd.xlane.f32.xlu0 %v210
    %v212 = vpop.xlane.xlu0 %211
    %v213 = vsel %vm60, %v181, 0.0
    %214 = vadd.xlane.f32.xlu0 %v213
    %v215 = vpop.xlane.xlu0 %214
    %v216 = vsel %vm60, %v182, 0.0
    %217 = vadd.xlane.f32.xlu0 %v216
    %v218 = vpop.xlane.xlu0 %217
    %v219 = vsel %vm60, %v183, 0.0
    %220 = vadd.xlane.f32.xlu0 %v219
    %v221 = vpop.xlane.xlu0 %220
    %v222 = vsel %vm60, %v184, 0.0
    %223 = vadd.xlane.f32.xlu0 %v222
    %v224 = vpop.xlane.xlu0 %223
    %v225 = vsel %vm60, %v185, 0.0
    %226 = vadd.xlane.f32.xlu0 %v225
    %v227 = vpop.xlane.xlu0 %226
    %v228 = vsel %vm60, %v186, 0.0
    %229 = vadd.xlane.f32.xlu0 %v228
    %v230 = vpop.xlane.xlu0 %229
    %v231 = vsel %vm60, %v187, 0.0
    %232 = vadd.xlane.f32.xlu0 %v231
    %v233 = vpop.xlane.xlu0 %232
    %v234 = vsel %vm60, %v188, 0.0
    %235 = vadd.xlane.f32.xlu0 %v234
    %v236 = vpop.xlane.xlu0 %235
    %v237 = vmax.f32 %v191, 1e-24
    %v238 = vmax.f32 %v194, 1e-24
    %v239 = vmax.f32 %v197, 1e-24
    %v240 = vmax.f32 %v200, 1e-24
    %v241 = vmax.f32 %v203, 1e-24
    %v242 = vmax.f32 %v206, 1e-24
    %v243 = vmax.f32 %v209, 1e-24
    %v244 = vmax.f32 %v212, 1e-24
    %v245 = vmax.f32 %v215, 1e-24
    %v246 = vmax.f32 %v218, 1e-24
    %v247 = vmax.f32 %v221, 1e-24
    %v248 = vmax.f32 %v224, 1e-24
    %v249 = vmax.f32 %v227, 1e-24
    %v250 = vmax.f32 %v230, 1e-24
    %v251 = vmax.f32 %v233, 1e-24
    %v252 = vmax.f32 %v236, 1e-24
    %v253 = vrsqrt.pop %v237
    %v254 = vrsqrt.pop %v238
    %v255 = vrsqrt.pop %v239
    %v256 = vrsqrt.pop %v240
    %v257 = vrsqrt.pop %v241
    %v258 = vrsqrt.pop %v242
    %v259 = vrsqrt.pop %v243
    %v260 = vrsqrt.pop %v244
    %v261 = vrsqrt.pop %v245
    %v262 = vrsqrt.pop %v246
    %v263 = vrsqrt.pop %v247
    %v264 = vrsqrt.pop %v248
    %v265 = vrsqrt.pop %v249
    %v266 = vrsqrt.pop %v250
    %v267 = vrsqrt.pop %v251
    %v268 = vrsqrt.pop %v252
    %v269 = vmul.f32 %v157, %v253
    %v270 = vmul.f32 %v158, %v254
    %v271 = vmul.f32 %v159, %v255
    %v272 = vmul.f32 %v160, %v256
    %v273 = vmul.f32 %v161, %v257
    %v274 = vmul.f32 %v162, %v258
    %v275 = vmul.f32 %v163, %v259
    %v276 = vmul.f32 %v164, %v260
    %v277 = vmul.f32 %v165, %v261
    %v278 = vmul.f32 %v166, %v262
    %v279 = vmul.f32 %v167, %v263
    %v280 = vmul.f32 %v168, %v264
    %v281 = vmul.f32 %v169, %v265
    %v282 = vmul.f32 %v170, %v266
    %v283 = vmul.f32 %v171, %v267
    %v284 = vmul.f32 %v172, %v268
    %v286 = vsel %vm60, %v141, 0
    %v289 = vsel %vm60, %v142, 0
    %v292 = vsel %vm60, %v143, 0
    %v295 = vsel %vm60, %v144, 0
    %v298 = vsel %vm60, %v145, 0
    %v301 = vsel %vm60, %v146, 0
    %v304 = vsel %vm60, %v147, 0
    %v307 = vsel %vm60, %v148, 0
    %v310 = vsel %vm60, %v149, 0
    %v313 = vsel %vm60, %v150, 0
    %v316 = vsel %vm60, %v151, 0
    %v319 = vsel %vm60, %v152, 0
    %v322 = vsel %vm60, %v153, 0
    %v325 = vsel %vm60, %v154, 0
    %v328 = vsel %vm60, %v155, 0
    %v331 = vsel %vm60, %v156, 0
    %v334 = vsel %vm60, %v269, 0
    %v337 = vsel %vm60, %v270, 0
    %v340 = vsel %vm60, %v271, 0
    %v343 = vsel %vm60, %v272, 0
    %v346 = vsel %vm60, %v273, 0
    %v349 = vsel %vm60, %v274, 0
    %v352 = vsel %vm60, %v275, 0
    %v355 = vsel %vm60, %v276, 0
    %v358 = vsel %vm60, %v277, 0
    %v361 = vsel %vm60, %v278, 0
    %v364 = vsel %vm60, %v279, 0
    %v367 = vsel %vm60, %v280, 0
    %v370 = vsel %vm60, %v281, 0
    %v373 = vsel %vm60, %v282, 0
    %v376 = vsel %vm60, %v283, 0
    %v379 = vsel %vm60, %v284, 0
    %381 = vmatprep.subr.mxu0 0.0
    %382 = vmatpush1.xpose.msra.mxu0 %v334
    %383 = vmatprep.subr.mxu0 0.0
    %384 = vmatpush1.xpose.msra.mxu0 %v337
    %385 = vmatprep.subr.mxu0 0.0
    %386 = vmatpush1.xpose.msra.mxu0 %v340
    %387 = vmatprep.subr.mxu0 0.0
    %388 = vmatpush1.xpose.msra.mxu0 %v343
    %389 = vmatprep.subr.mxu0 0.0
    %390 = vmatpush1.xpose.msra.mxu0 %v346
    %391 = vmatprep.subr.mxu0 0.0
    %392 = vmatpush1.xpose.msra.mxu0 %v349
    %393 = vmatprep.subr.mxu0 0.0
    %394 = vmatpush1.xpose.msra.mxu0 %v352
    %395 = vmatprep.subr.mxu0 0.0
    %396 = vmatpush1.xpose.msra.mxu0 %v355
    %397 = vmatprep.subr.mxu0 0.0
    %398 = vmatpush1.xpose.msra.mxu0 %v358
    %399 = vmatprep.subr.mxu0 0.0
    %400 = vmatpush1.xpose.msra.mxu0 %v361
    %401 = vmatprep.subr.mxu0 0.0
    %402 = vmatpush1.xpose.msra.mxu0 %v364
    %403 = vmatprep.subr.mxu0 0.0
    %404 = vmatpush1.xpose.msra.mxu0 %v367
    %405 = vmatprep.subr.mxu0 0.0
    %406 = vmatpush1.xpose.msra.mxu0 %v370
    %407 = vmatprep.subr.mxu0 0.0
    %408 = vmatpush1.xpose.msra.mxu0 %v373
    %409 = vmatprep.subr.mxu0 0.0
    %410 = vmatpush1.xpose.msra.mxu0 %v376
    %411 = vmatprep.subr.mxu0 0.0
    %412 = vmatpush1.xpose.msra.mxu0 %v379
    %413 = vmatprep.subr.mxu0 0.0
    %414 = vmatpush1.xpose.msra.mxu0 0.0
    %415 = vmatprep.subr.mxu0 0.0
    %416 = vmatpush1.xpose.msra.mxu0 0.0
    %417 = vmatprep.subr.mxu0 0.0
    %418 = vmatpush1.xpose.msra.mxu0 0.0
    %419 = vmatprep.subr.mxu0 0.0
    %420 = vmatpush1.xpose.msra.mxu0 0.0
    %421 = vmatprep.subr.mxu0 0.0
    %422 = vmatpush1.xpose.msra.mxu0 0.0
    %423 = vmatprep.subr.mxu0 0.0
    %424 = vmatpush1.xpose.msra.mxu0 0.0
    %425 = vmatprep.subr.mxu0 0.0
    %426 = vmatpush1.xpose.msra.mxu0 0.0
    %427 = vmatprep.subr.mxu0 0.0
    %428 = vmatpush1.xpose.msra.mxu0 0.0
    %429 = vmatprep.subr.mxu0 0.0
    %430 = vmatpush1.xpose.msra.mxu0 0.0
    %431 = vmatprep.subr.mxu0 0.0
    %432 = vmatpush1.xpose.msra.mxu0 0.0
    %433 = vmatprep.subr.mxu0 0.0
    %434 = vmatpush1.xpose.msra.mxu0 0.0
    %435 = vmatprep.subr.mxu0 0.0
    %436 = vmatpush1.xpose.msra.mxu0 0.0
    %437 = vmatprep.subr.mxu0 0.0
    %438 = vmatpush1.xpose.msra.mxu0 0.0
    %439 = vmatprep.subr.mxu0 0.0
    %440 = vmatpush1.xpose.msra.mxu0 0.0
    %441 = vmatprep.subr.mxu0 0.0
    %442 = vmatpush1.xpose.msra.mxu0 0.0
    %443 = vmatprep.subr.mxu0 0.0
    %444 = vmatpush1.xpose.msra.mxu0 0.0
    %445 = vmatprep.mubr.f32.mxu0 0.0
    %446 = vmatmul.mubr.f32.gmra.mrb[0].mxu0 %v286
    %v447 = vpop.f32.mrb[0].mxu0
    %v448 = vadd.f32 0.0, %v447
    %v449 = vpop.f32.mrb[0].mxu0
    %450 = vmatprep.mubr.f32.mxu0 0.0
    %451 = vmatmul.mubr.f32.gmra.mrb[0].mxu0 %v289
    %v452 = vpop.f32.mrb[0].mxu0
    %v453 = vadd.f32 0.0, %v452
    %v454 = vpop.f32.mrb[0].mxu0
    %455 = vmatprep.mubr.f32.mxu0 0.0
    %456 = vmatmul.mubr.f32.gmra.mrb[0].mxu0 %v292
    %v457 = vpop.f32.mrb[0].mxu0
    %v458 = vadd.f32 0.0, %v457
    %v459 = vpop.f32.mrb[0].mxu0
    %460 = vmatprep.mubr.f32.mxu0 0.0
    %461 = vmatmul.mubr.f32.gmra.mrb[0].mxu0 %v295
    %v462 = vpop.f32.mrb[0].mxu0
    %v463 = vadd.f32 0.0, %v462
    %v464 = vpop.f32.mrb[0].mxu0
    %465 = vmatprep.mubr.f32.mxu0 0.0
    %466 = vmatmul.mubr.f32.gmra.mrb[0].mxu0 %v298
    %v467 = vpop.f32.mrb[0].mxu0
    %v468 = vadd.f32 0.0, %v467
    %v469 = vpop.f32.mrb[0].mxu0
    %470 = vmatprep.mubr.f32.mxu0 0.0
    %471 = vmatmul.mubr.f32.gmra.mrb[0].mxu0 %v301
    %v472 = vpop.f32.mrb[0].mxu0
    %v473 = vadd.f32 0.0, %v472
    %v474 = vpop.f32.mrb[0].mxu0
    %475 = vmatprep.mubr.f32.mxu0 0.0
    %476 = vmatmul.mubr.f32.gmra.mrb[0].mxu0 %v304
    %v477 = vpop.f32.mrb[0].mxu0
    %v478 = vadd.f32 0.0, %v477
    %v479 = vpop.f32.mrb[0].mxu0
    %480 = vmatprep.mubr.f32.mxu0 0.0
    %481 = vmatmul.mubr.f32.gmra.mrb[0].mxu0 %v307
    %v482 = vpop.f32.mrb[0].mxu0
    %v483 = vadd.f32 0.0, %v482
    %v484 = vpop.f32.mrb[0].mxu0
    %485 = vmatprep.mubr.f32.mxu0 0.0
    %486 = vmatmul.mubr.f32.gmra.mrb[0].mxu0 %v310
    %v487 = vpop.f32.mrb[0].mxu0
    %v488 = vadd.f32 0.0, %v487
    %v489 = vpop.f32.mrb[0].mxu0
    %490 = vmatprep.mubr.f32.mxu0 0.0
    %491 = vmatmul.mubr.f32.gmra.mrb[0].mxu0 %v313
    %v492 = vpop.f32.mrb[0].mxu0
    %v493 = vadd.f32 0.0, %v492
    %v494 = vpop.f32.mrb[0].mxu0
    %495 = vmatprep.mubr.f32.mxu0 0.0
    %496 = vmatmul.mubr.f32.gmra.mrb[0].mxu0 %v316
    %v497 = vpop.f32.mrb[0].mxu0
    %v498 = vadd.f32 0.0, %v497
    %v499 = vpop.f32.mrb[0].mxu0
    %500 = vmatprep.mubr.f32.mxu0 0.0
    %501 = vmatmul.mubr.f32.gmra.mrb[0].mxu0 %v319
    %v502 = vpop.f32.mrb[0].mxu0
    %v503 = vadd.f32 0.0, %v502
    %v504 = vpop.f32.mrb[0].mxu0
    %505 = vmatprep.mubr.f32.mxu0 0.0
    %506 = vmatmul.mubr.f32.gmra.mrb[0].mxu0 %v322
    %v507 = vpop.f32.mrb[0].mxu0
    %v508 = vadd.f32 0.0, %v507
    %v509 = vpop.f32.mrb[0].mxu0
    %510 = vmatprep.mubr.f32.mxu0 0.0
    %511 = vmatmul.mubr.f32.gmra.mrb[0].mxu0 %v325
    %v512 = vpop.f32.mrb[0].mxu0
    %v513 = vadd.f32 0.0, %v512
    %v514 = vpop.f32.mrb[0].mxu0
    %515 = vmatprep.mubr.f32.mxu0 0.0
    %516 = vmatmul.mubr.f32.gmra.mrb[0].mxu0 %v328
    %v517 = vpop.f32.mrb[0].mxu0
    %v518 = vadd.f32 0.0, %v517
    %v519 = vpop.f32.mrb[0].mxu0
    %520 = vmatprep.mubr.f32.mxu0 0.0
    %521 = vmatmul.mubr.f32.gmra.mrb[0].mxu0 %v331
    %v522 = vpop.f32.mrb[0].mxu0
    %v523 = vadd.f32 0.0, %v522
    %v524 = vpop.f32.mrb[0].mxu0
    %525 = vdwg.mxu0
    %v526 = vmul.f32 %v448, 16.0
    %v527 = vmul.f32 %v453, 16.0
    %v528 = vmul.f32 %v458, 16.0
    %v529 = vmul.f32 %v463, 16.0
    %v530 = vmul.f32 %v468, 16.0
    %v531 = vmul.f32 %v473, 16.0
    %v532 = vmul.f32 %v478, 16.0
    %v533 = vmul.f32 %v483, 16.0
    %v534 = vmul.f32 %v488, 16.0
    %v535 = vmul.f32 %v493, 16.0
    %v536 = vmul.f32 %v498, 16.0
    %v537 = vmul.f32 %v503, 16.0
    %v538 = vmul.f32 %v508, 16.0
    %v539 = vmul.f32 %v513, 16.0
    %v540 = vmul.f32 %v518, 16.0
    %v541 = vmul.f32 %v523, 16.0
    %v542 = vsub.f32 %v526, 6.4
    %v543 = vsub.f32 %v527, 6.4
    %v544 = vsub.f32 %v528, 6.4
    %v545 = vsub.f32 %v529, 6.4
    %v546 = vsub.f32 %v530, 6.4
    %v547 = vsub.f32 %v531, 6.4
    %v548 = vsub.f32 %v532, 6.4
    %v549 = vsub.f32 %v533, 6.4
    %v550 = vsub.f32 %v534, 6.4
    %v551 = vsub.f32 %v535, 6.4
    %v552 = vsub.f32 %v536, 6.4
    %v553 = vsub.f32 %v537, 6.4
    %v554 = vsub.f32 %v538, 6.4
    %v555 = vsub.f32 %v539, 6.4
    %v556 = vsub.f32 %v540, 6.4
    %v557 = vsub.f32 %v541, 6.4
    %v558 = vxor.u32 %v542, 2147483648
    %v559 = vxor.u32 %v543, 2147483648
    %v560 = vxor.u32 %v544, 2147483648
    %v561 = vxor.u32 %v545, 2147483648
    %v562 = vxor.u32 %v546, 2147483648
    %v563 = vxor.u32 %v547, 2147483648
    %v564 = vxor.u32 %v548, 2147483648
    %v565 = vxor.u32 %v549, 2147483648
    %v566 = vxor.u32 %v550, 2147483648
    %v567 = vxor.u32 %v551, 2147483648
    %v568 = vxor.u32 %v552, 2147483648
    %v569 = vxor.u32 %v553, 2147483648
    %v570 = vxor.u32 %v554, 2147483648
    %v571 = vxor.u32 %v555, 2147483648
    %v572 = vxor.u32 %v556, 2147483648
    %v573 = vxor.u32 %v557, 2147483648
    %v574 = vmul.f32 %v558, 1.442695
    %v575 = vpow.pop %v574
    %v576 = vmul.f32 %v559, 1.442695
    %v577 = vpow.pop %v576
    %v578 = vmul.f32 %v560, 1.442695
    %v579 = vpow.pop %v578
    %v580 = vmul.f32 %v561, 1.442695
    %v581 = vpow.pop %v580
    %v582 = vmul.f32 %v562, 1.442695
    %v583 = vpow.pop %v582
    %v584 = vmul.f32 %v563, 1.442695
    %v585 = vpow.pop %v584
    %v586 = vmul.f32 %v564, 1.442695
    %v587 = vpow.pop %v586
    %v588 = vmul.f32 %v565, 1.442695
    %v589 = vpow.pop %v588
    %v590 = vmul.f32 %v566, 1.442695
    %v591 = vpow.pop %v590
    %v592 = vmul.f32 %v567, 1.442695
    %v593 = vpow.pop %v592
    %v594 = vmul.f32 %v568, 1.442695
    %v595 = vpow.pop %v594
    %v596 = vmul.f32 %v569, 1.442695
    %v597 = vpow.pop %v596
    %v598 = vmul.f32 %v570, 1.442695
    %v599 = vpow.pop %v598
    %v600 = vmul.f32 %v571, 1.442695
    %v601 = vpow.pop %v600
    %v602 = vmul.f32 %v572, 1.442695
    %v603 = vpow.pop %v602
    %v604 = vmul.f32 %v573, 1.442695
    %v605 = vpow.pop %v604
    %v606 = vadd.f32 %v575, 1.0
    %v607 = vadd.f32 %v577, 1.0
    %v608 = vadd.f32 %v579, 1.0
    %v609 = vadd.f32 %v581, 1.0
    %v610 = vadd.f32 %v583, 1.0
    %v611 = vadd.f32 %v585, 1.0
    %v612 = vadd.f32 %v587, 1.0
    %v613 = vadd.f32 %v589, 1.0
    %v614 = vadd.f32 %v591, 1.0
    %v615 = vadd.f32 %v593, 1.0
    %v616 = vadd.f32 %v595, 1.0
    %v617 = vadd.f32 %v597, 1.0
    %v618 = vadd.f32 %v599, 1.0
    %v619 = vadd.f32 %v601, 1.0
    %v620 = vadd.f32 %v603, 1.0
    %v621 = vadd.f32 %v605, 1.0
    %v622 = vrcp.pop %v606
    %v623 = vmul.f32 1.0, %v622
    %v624 = vrcp.pop %v607
    %v625 = vmul.f32 1.0, %v624
    %v626 = vrcp.pop %v608
    %v627 = vmul.f32 1.0, %v626
    %v628 = vrcp.pop %v609
    %v629 = vmul.f32 1.0, %v628
    %v630 = vrcp.pop %v610
    %v631 = vmul.f32 1.0, %v630
    %v632 = vrcp.pop %v611
    %v633 = vmul.f32 1.0, %v632
    %v634 = vrcp.pop %v612
    %v635 = vmul.f32 1.0, %v634
    %v636 = vrcp.pop %v613
    %v637 = vmul.f32 1.0, %v636
    %v638 = vrcp.pop %v614
    %v639 = vmul.f32 1.0, %v638
    %v640 = vrcp.pop %v615
    %v641 = vmul.f32 1.0, %v640
    %v642 = vrcp.pop %v616
    %v643 = vmul.f32 1.0, %v642
    %v644 = vrcp.pop %v617
    %v645 = vmul.f32 1.0, %v644
    %v646 = vrcp.pop %v618
    %v647 = vmul.f32 1.0, %v646
    %v648 = vrcp.pop %v619
    %v649 = vmul.f32 1.0, %v648
    %v650 = vrcp.pop %v620
    %v651 = vmul.f32 1.0, %v650
    %v652 = vrcp.pop %v621
    %v653 = vmul.f32 1.0, %v652
    %654 = vst [vmem:[#allocation2] sm:$0xff] %v448
    %655 = vst [vmem:[#allocation2 + $0x8] sm:$0xff] %v453
    %656 = vst [vmem:[#allocation2 + $0x10] sm:$0xff] %v458
    %657 = vst [vmem:[#allocation2 + $0x18] sm:$0xff] %v463
    %658 = vst [vmem:[#allocation2 + $0x20] sm:$0xff] %v468
    %659 = vst [vmem:[#allocation2 + $0x28] sm:$0xff] %v473
    %660 = vst [vmem:[#allocation2 + $0x30] sm:$0xff] %v478
    %661 = vst [vmem:[#allocation2 + $0x38] sm:$0xff] %v483
    %662 = vst [vmem:[#allocation2 + $0x40] sm:$0xff] %v488
    %663 = vst [vmem:[#allocation2 + $0x48] sm:$0xff] %v493
    %664 = vst [vmem:[#allocation2 + $0x50] sm:$0xff] %v498
    %665 = vst [vmem:[#allocation2 + $0x58] sm:$0xff] %v503
    %666 = vst [vmem:[#allocation2 + $0x60] sm:$0xff] %v508
    %667 = vst [vmem:[#allocation2 + $0x68] sm:$0xff] %v513
    %668 = vst [vmem:[#allocation2 + $0x70] sm:$0xff] %v518
    %669 = vst [vmem:[#allocation2 + $0x78] sm:$0xff] %v523
    %670 = vst [vmem:[#allocation4] sm:$0xff] %v623
    %671 = vst [vmem:[#allocation4 + $0x8] sm:$0xff] %v625
    %672 = vst [vmem:[#allocation4 + $0x10] sm:$0xff] %v627
    %673 = vst [vmem:[#allocation4 + $0x18] sm:$0xff] %v629
    %674 = vst [vmem:[#allocation4 + $0x20] sm:$0xff] %v631
    %675 = vst [vmem:[#allocation4 + $0x28] sm:$0xff] %v633
    %676 = vst [vmem:[#allocation4 + $0x30] sm:$0xff] %v635
    %677 = vst [vmem:[#allocation4 + $0x38] sm:$0xff] %v637
    %678 = vst [vmem:[#allocation4 + $0x40] sm:$0xff] %v639
    %679 = vst [vmem:[#allocation4 + $0x48] sm:$0xff] %v641
    %680 = vst [vmem:[#allocation4 + $0x50] sm:$0xff] %v643
    %681 = vst [vmem:[#allocation4 + $0x58] sm:$0xff] %v645
    %682 = vst [vmem:[#allocation4 + $0x60] sm:$0xff] %v647
    %683 = vst [vmem:[#allocation4 + $0x68] sm:$0xff] %v649
    %684 = vst [vmem:[#allocation4 + $0x70] sm:$0xff] %v651
    %685 = vst [vmem:[#allocation4 + $0x78] sm:$0xff] %v653
    %v686 = vld [vmem:[%s4] sm:$0xff]
    %v687 = vld [vmem:[%s4 + $0x8] sm:$0xff]
    %v688 = vld [vmem:[%s4 + $0x10] sm:$0xff]
    %v689 = vld [vmem:[%s4 + $0x18] sm:$0xff]
    %v690 = vld [vmem:[%s4 + $0x20] sm:$0xff]
    %v691 = vld [vmem:[%s4 + $0x28] sm:$0xff]
    %v692 = vld [vmem:[%s4 + $0x30] sm:$0xff]
    %v693 = vld [vmem:[%s4 + $0x38] sm:$0xff]
    %v694 = vld [vmem:[%s4 + $0x40] sm:$0xff]
    %v695 = vld [vmem:[%s4 + $0x48] sm:$0xff]
    %v696 = vld [vmem:[%s4 + $0x50] sm:$0xff]
    %v697 = vld [vmem:[%s4 + $0x58] sm:$0xff]
    %v698 = vld [vmem:[%s4 + $0x60] sm:$0xff]
    %v699 = vld [vmem:[%s4 + $0x68] sm:$0xff]
    %v700 = vld [vmem:[%s4 + $0x70] sm:$0xff]
    %v701 = vld [vmem:[%s4 + $0x78] sm:$0xff]
    %v702 = vmax.f32 %v686, 1e-07
    %v703 = vmax.f32 %v687, 1e-07
    %v704 = vmax.f32 %v688, 1e-07
    %v705 = vmax.f32 %v689, 1e-07
    %v706 = vmax.f32 %v690, 1e-07
    %v707 = vmax.f32 %v691, 1e-07
    %v708 = vmax.f32 %v692, 1e-07
    %v709 = vmax.f32 %v693, 1e-07
    %v710 = vmax.f32 %v694, 1e-07
    %v711 = vmax.f32 %v695, 1e-07
    %v712 = vmax.f32 %v696, 1e-07
    %v713 = vmax.f32 %v697, 1e-07
    %v714 = vmax.f32 %v698, 1e-07
    %v715 = vmax.f32 %v699, 1e-07
    %v716 = vmax.f32 %v700, 1e-07
    %v717 = vmax.f32 %v701, 1e-07
    %v718 = vmin.f32 %v702, 0.9999999
    %v719 = vmin.f32 %v703, 0.9999999
    %v720 = vmin.f32 %v704, 0.9999999
    %v721 = vmin.f32 %v705, 0.9999999
    %v722 = vmin.f32 %v706, 0.9999999
    %v723 = vmin.f32 %v707, 0.9999999
    %v724 = vmin.f32 %v708, 0.9999999
    %v725 = vmin.f32 %v709, 0.9999999
    %v726 = vmin.f32 %v710, 0.9999999
    %v727 = vmin.f32 %v711, 0.9999999
    %v728 = vmin.f32 %v712, 0.9999999
    %v729 = vmin.f32 %v713, 0.9999999
    %v730 = vmin.f32 %v714, 0.9999999
    %v731 = vmin.f32 %v715, 0.9999999
    %v732 = vmin.f32 %v716, 0.9999999
    %v733 = vmin.f32 %v717, 0.9999999
    %v734 = vld [vmem:[%s5] sm:$0x1]
    %v735 = vmax.f32 %v734, 1e-07
    %v736 = vmin.f32 %v735, 0.9999999
    %v737 = vlog2.pop %v718
    %v738 = vmul.f32 %v737, 0.6931472
    %v739 = vlog2.pop %v719
    %v740 = vmul.f32 %v739, 0.6931472
    %v741 = vlog2.pop %v720
    %v742 = vmul.f32 %v741, 0.6931472
    %v743 = vlog2.pop %v721
    %v744 = vmul.f32 %v743, 0.6931472
    %v745 = vlog2.pop %v722
    %v746 = vmul.f32 %v745, 0.6931472
    %v747 = vlog2.pop %v723
    %v748 = vmul.f32 %v747, 0.6931472
    %v749 = vlog2.pop %v724
    %v750 = vmul.f32 %v749, 0.6931472
    %v751 = vlog2.pop %v725
    %v752 = vmul.f32 %v751, 0.6931472
    %v753 = vlog2.pop %v726
    %v754 = vmul.f32 %v753, 0.6931472
    %v755 = vlog2.pop %v727
    %v756 = vmul.f32 %v755, 0.6931472
    %v757 = vlog2.pop %v728
    %v758 = vmul.f32 %v757, 0.6931472
    %v759 = vlog2.pop %v729
    %v760 = vmul.f32 %v759, 0.6931472
    %v761 = vlog2.pop %v730
    %v762 = vmul.f32 %v761, 0.6931472
    %v763 = vlog2.pop %v731
    %v764 = vmul.f32 %v763, 0.6931472
    %v765 = vlog2.pop %v732
    %v766 = vmul.f32 %v765, 0.6931472
    %v767 = vlog2.pop %v733
    %v768 = vmul.f32 %v767, 0.6931472
    %v769 = vlog2.pop %v736
    %v770 = vmul.f32 %v769, 0.6931472
    %772 = vset.pattern.permute.xlu0 0
    %773 = vperm.xlu0 %772, %v738
    %v774 = vpop.permute.xlu0 %773
    %777 = vset.pattern.permute.xlu0 0
    %778 = vperm.xlu0 %777, %v740
    %v779 = vpop.permute.xlu0 %778
    %782 = vset.pattern.permute.xlu0 0
    %783 = vperm.xlu0 %782, %v742
    %v784 = vpop.permute.xlu0 %783
    %787 = vset.pattern.permute.xlu0 0
    %788 = vperm.xlu0 %787, %v744
    %v789 = vpop.permute.xlu0 %788
    %792 = vset.pattern.permute.xlu0 0
    %793 = vperm.xlu0 %792, %v746
    %v794 = vpop.permute.xlu0 %793
    %797 = vset.pattern.permute.xlu0 0
    %798 = vperm.xlu0 %797, %v748
    %v799 = vpop.permute.xlu0 %798
    %802 = vset.pattern.permute.xlu0 0
    %803 = vperm.xlu0 %802, %v750
    %v804 = vpop.permute.xlu0 %803
    %807 = vset.pattern.permute.xlu0 0
    %808 = vperm.xlu0 %807, %v752
    %v809 = vpop.permute.xlu0 %808
    %812 = vset.pattern.permute.xlu0 0
    %813 = vperm.xlu0 %812, %v754
    %v814 = vpop.permute.xlu0 %813
    %817 = vset.pattern.permute.xlu0 0
    %818 = vperm.xlu0 %817, %v756
    %v819 = vpop.permute.xlu0 %818
    %822 = vset.pattern.permute.xlu0 0
    %823 = vperm.xlu0 %822, %v758
    %v824 = vpop.permute.xlu0 %823
    %827 = vset.pattern.permute.xlu0 0
    %828 = vperm.xlu0 %827, %v760
    %v829 = vpop.permute.xlu0 %828
    %832 = vset.pattern.permute.xlu0 0
    %833 = vperm.xlu0 %832, %v762
    %v834 = vpop.permute.xlu0 %833
    %837 = vset.pattern.permute.xlu0 0
    %838 = vperm.xlu0 %837, %v764
    %v839 = vpop.permute.xlu0 %838
    %842 = vset.pattern.permute.xlu0 0
    %843 = vperm.xlu0 %842, %v766
    %v844 = vpop.permute.xlu0 %843
    %847 = vset.pattern.permute.xlu0 0
    %848 = vperm.xlu0 %847, %v768
    %v849 = vpop.permute.xlu0 %848
    %v852 = vlaneseq
    %v853 = vshrl.u32 %v852, 7
    %v854 = vsub.s32 0, %v853
    %v855 = vrot.slane %v770, %v854
    %v857 = vmin.f32 %v774, %v855
    %v858 = vmin.f32 %v779, %v855
    %v859 = vmin.f32 %v784, %v855
    %v860 = vmin.f32 %v789, %v855
    %v861 = vmin.f32 %v794, %v855
    %v862 = vmin.f32 %v799, %v855
    %v863 = vmin.f32 %v804, %v855
    %v864 = vmin.f32 %v809, %v855
    %v865 = vmin.f32 %v814, %v855
    %v866 = vmin.f32 %v819, %v855
    %v867 = vmin.f32 %v824, %v855
    %v868 = vmin.f32 %v829, %v855
    %v869 = vmin.f32 %v834, %v855
    %v870 = vmin.f32 %v839, %v855
    %v871 = vmin.f32 %v844, %v855
    %v872 = vmin.f32 %v849, %v855
    %v873 = vsub.f32 1.0, %v718
    %v874 = vsub.f32 1.0, %v719
    %v875 = vsub.f32 1.0, %v720
    %v876 = vsub.f32 1.0, %v721
    %v877 = vsub.f32 1.0, %v722
    %v878 = vsub.f32 1.0, %v723
    %v879 = vsub.f32 1.0, %v724
    %v880 = vsub.f32 1.0, %v725
    %v881 = vsub.f32 1.0, %v726
    %v882 = vsub.f32 1.0, %v727
    %v883 = vsub.f32 1.0, %v728
    %v884 = vsub.f32 1.0, %v729
    %v885 = vsub.f32 1.0, %v730
    %v886 = vsub.f32 1.0, %v731
    %v887 = vsub.f32 1.0, %v732
    %v888 = vsub.f32 1.0, %v733
    %v889 = vlog2.pop %v873
    %v890 = vmul.f32 %v889, 0.6931472
    %v891 = vlog2.pop %v874
    %v892 = vmul.f32 %v891, 0.6931472
    %v893 = vlog2.pop %v875
    %v894 = vmul.f32 %v893, 0.6931472
    %v895 = vlog2.pop %v876
    %v896 = vmul.f32 %v895, 0.6931472
    %v897 = vlog2.pop %v877
    %v898 = vmul.f32 %v897, 0.6931472
    %v899 = vlog2.pop %v878
    %v900 = vmul.f32 %v899, 0.6931472
    %v901 = vlog2.pop %v879
    %v902 = vmul.f32 %v901, 0.6931472
    %v903 = vlog2.pop %v880
    %v904 = vmul.f32 %v903, 0.6931472
    %v905 = vlog2.pop %v881
    %v906 = vmul.f32 %v905, 0.6931472
    %v907 = vlog2.pop %v882
    %v908 = vmul.f32 %v907, 0.6931472
    %v909 = vlog2.pop %v883
    %v910 = vmul.f32 %v909, 0.6931472
    %v911 = vlog2.pop %v884
    %v912 = vmul.f32 %v911, 0.6931472
    %v913 = vlog2.pop %v885
    %v914 = vmul.f32 %v913, 0.6931472
    %v915 = vlog2.pop %v886
    %v916 = vmul.f32 %v915, 0.6931472
    %v917 = vlog2.pop %v887
    %v918 = vmul.f32 %v917, 0.6931472
    %v919 = vlog2.pop %v888
    %v920 = vmul.f32 %v919, 0.6931472
    %v921 = vsub.f32 1.0, %v736
    %v922 = vlog2.pop %v921
    %v923 = vmul.f32 %v922, 0.6931472
    %925 = vset.pattern.permute.xlu0 0
    %926 = vperm.xlu0 %925, %v890
    %v927 = vpop.permute.xlu0 %926
    %930 = vset.pattern.permute.xlu0 0
    %931 = vperm.xlu0 %930, %v892
    %v932 = vpop.permute.xlu0 %931
    %935 = vset.pattern.permute.xlu0 0
    %936 = vperm.xlu0 %935, %v894
    %v937 = vpop.permute.xlu0 %936
    %940 = vset.pattern.permute.xlu0 0
    %941 = vperm.xlu0 %940, %v896
    %v942 = vpop.permute.xlu0 %941
    %945 = vset.pattern.permute.xlu0 0
    %946 = vperm.xlu0 %945, %v898
    %v947 = vpop.permute.xlu0 %946
    %950 = vset.pattern.permute.xlu0 0
    %951 = vperm.xlu0 %950, %v900
    %v952 = vpop.permute.xlu0 %951
    %955 = vset.pattern.permute.xlu0 0
    %956 = vperm.xlu0 %955, %v902
    %v957 = vpop.permute.xlu0 %956
    %960 = vset.pattern.permute.xlu0 0
    %961 = vperm.xlu0 %960, %v904
    %v962 = vpop.permute.xlu0 %961
    %965 = vset.pattern.permute.xlu0 0
    %966 = vperm.xlu0 %965, %v906
    %v967 = vpop.permute.xlu0 %966
    %970 = vset.pattern.permute.xlu0 0
    %971 = vperm.xlu0 %970, %v908
    %v972 = vpop.permute.xlu0 %971
    %975 = vset.pattern.permute.xlu0 0
    %976 = vperm.xlu0 %975, %v910
    %v977 = vpop.permute.xlu0 %976
    %980 = vset.pattern.permute.xlu0 0
    %981 = vperm.xlu0 %980, %v912
    %v982 = vpop.permute.xlu0 %981
    %985 = vset.pattern.permute.xlu0 0
    %986 = vperm.xlu0 %985, %v914
    %v987 = vpop.permute.xlu0 %986
    %990 = vset.pattern.permute.xlu0 0
    %991 = vperm.xlu0 %990, %v916
    %v992 = vpop.permute.xlu0 %991
    %995 = vset.pattern.permute.xlu0 0
    %996 = vperm.xlu0 %995, %v918
    %v997 = vpop.permute.xlu0 %996
    %1000 = vset.pattern.permute.xlu0 0
    %1001 = vperm.xlu0 %1000, %v920
    %v1002 = vpop.permute.xlu0 %1001
    %v1005 = vlaneseq
    %v1006 = vshrl.u32 %v1005, 7
    %v1007 = vsub.s32 0, %v1006
    %v1008 = vrot.slane %v923, %v1007
    %v1010 = vmax.f32 %v927, %v1008
    %v1011 = vmax.f32 %v932, %v1008
    %v1012 = vmax.f32 %v937, %v1008
    %v1013 = vmax.f32 %v942, %v1008
    %v1014 = vmax.f32 %v947, %v1008
    %v1015 = vmax.f32 %v952, %v1008
    %v1016 = vmax.f32 %v957, %v1008
    %v1017 = vmax.f32 %v962, %v1008
    %v1018 = vmax.f32 %v967, %v1008
    %v1019 = vmax.f32 %v972, %v1008
    %v1020 = vmax.f32 %v977, %v1008
    %v1021 = vmax.f32 %v982, %v1008
    %v1022 = vmax.f32 %v987, %v1008
    %v1023 = vmax.f32 %v992, %v1008
    %v1024 = vmax.f32 %v997, %v1008
    %v1025 = vmax.f32 %v1002, %v1008
    %v1026 = vsub.f32 0.0, %v623
    %v1027 = vsub.f32 0.0, %v625
    %v1028 = vsub.f32 0.0, %v627
    %v1029 = vsub.f32 0.0, %v629
    %v1030 = vsub.f32 0.0, %v631
    %v1031 = vsub.f32 0.0, %v633
    %v1032 = vsub.f32 0.0, %v635
    %v1033 = vsub.f32 0.0, %v637
    %v1034 = vsub.f32 0.0, %v639
    %v1035 = vsub.f32 0.0, %v641
    %v1036 = vsub.f32 0.0, %v643
    %v1037 = vsub.f32 0.0, %v645
    %v1038 = vsub.f32 0.0, %v647
    %v1039 = vsub.f32 0.0, %v649
    %v1040 = vsub.f32 0.0, %v651
    %v1041 = vsub.f32 0.0, %v653
    %v1042 = vmul.f32 %v1026, %v857
    %v1043 = vmul.f32 %v1027, %v858
    %v1044 = vmul.f32 %v1028, %v859
    %v1045 = vmul.f32 %v1029, %v860
    %v1046 = vmul.f32 %v1030, %v861
    %v1047 = vmul.f32 %v1031, %v862
    %v1048 = vmul.f32 %v1032, %v863
    %v1049 = vmul.f32 %v1033, %v864
    %v1050 = vmul.f32 %v1034, %v865
    %v1051 = vmul.f32 %v1035, %v866
    %v1052 = vmul.f32 %v1036, %v867
    %v1053 = vmul.f32 %v1037, %v868
    %v1054 = vmul.f32 %v1038, %v869
    %v1055 = vmul.f32 %v1039, %v870
    %v1056 = vmul.f32 %v1040, %v871
    %v1057 = vmul.f32 %v1041, %v872
    %v1058 = vsub.f32 1.0, %v623
    %v1059 = vsub.f32 1.0, %v625
    %v1060 = vsub.f32 1.0, %v627
    %v1061 = vsub.f32 1.0, %v629
    %v1062 = vsub.f32 1.0, %v631
    %v1063 = vsub.f32 1.0, %v633
    %v1064 = vsub.f32 1.0, %v635
    %v1065 = vsub.f32 1.0, %v637
    %v1066 = vsub.f32 1.0, %v639
    %v1067 = vsub.f32 1.0, %v641
    %v1068 = vsub.f32 1.0, %v643
    %v1069 = vsub.f32 1.0, %v645
    %v1070 = vsub.f32 1.0, %v647
    %v1071 = vsub.f32 1.0, %v649
    %v1072 = vsub.f32 1.0, %v651
    %v1073 = vsub.f32 1.0, %v653
    %v1074 = vmul.f32 %v1058, %v1010
    %v1075 = vmul.f32 %v1059, %v1011
    %v1076 = vmul.f32 %v1060, %v1012
    %v1077 = vmul.f32 %v1061, %v1013
    %v1078 = vmul.f32 %v1062, %v1014
    %v1079 = vmul.f32 %v1063, %v1015
    %v1080 = vmul.f32 %v1064, %v1016
    %v1081 = vmul.f32 %v1065, %v1017
    %v1082 = vmul.f32 %v1066, %v1018
    %v1083 = vmul.f32 %v1067, %v1019
    %v1084 = vmul.f32 %v1068, %v1020
    %v1085 = vmul.f32 %v1069, %v1021
    %v1086 = vmul.f32 %v1070, %v1022
    %v1087 = vmul.f32 %v1071, %v1023
    %v1088 = vmul.f32 %v1072, %v1024
    %v1089 = vmul.f32 %v1073, %v1025
    %v1090 = vsub.f32 %v1042, %v1074
    %v1091 = vsub.f32 %v1043, %v1075
    %v1092 = vsub.f32 %v1044, %v1076
    %v1093 = vsub.f32 %v1045, %v1077
    %v1094 = vsub.f32 %v1046, %v1078
    %v1095 = vsub.f32 %v1047, %v1079
    %v1096 = vsub.f32 %v1048, %v1080
    %v1097 = vsub.f32 %v1049, %v1081
    %v1098 = vsub.f32 %v1050, %v1082
    %v1099 = vsub.f32 %v1051, %v1083
    %v1100 = vsub.f32 %v1052, %v1084
    %v1101 = vsub.f32 %v1053, %v1085
    %v1102 = vsub.f32 %v1054, %v1086
    %v1103 = vsub.f32 %v1055, %v1087
    %v1104 = vsub.f32 %v1056, %v1088
    %v1105 = vsub.f32 %v1057, %v1089
    %v1106 = vld [vmem:[%s2] sm:$0xff]
    %v1107 = vld [vmem:[%s2 + $0x8] sm:$0xff]
    %v1108 = vld [vmem:[%s2 + $0x10] sm:$0xff]
    %v1109 = vld [vmem:[%s2 + $0x18] sm:$0xff]
    %v1110 = vld [vmem:[%s2 + $0x20] sm:$0xff]
    %v1111 = vld [vmem:[%s2 + $0x28] sm:$0xff]
    %v1112 = vld [vmem:[%s2 + $0x30] sm:$0xff]
    %v1113 = vld [vmem:[%s2 + $0x38] sm:$0xff]
    %v1114 = vld [vmem:[%s2 + $0x40] sm:$0xff]
    %v1115 = vld [vmem:[%s2 + $0x48] sm:$0xff]
    %v1116 = vld [vmem:[%s2 + $0x50] sm:$0xff]
    %v1117 = vld [vmem:[%s2 + $0x58] sm:$0xff]
    %v1118 = vld [vmem:[%s2 + $0x60] sm:$0xff]
    %v1119 = vld [vmem:[%s2 + $0x68] sm:$0xff]
    %v1120 = vld [vmem:[%s2 + $0x70] sm:$0xff]
    %v1121 = vld [vmem:[%s2 + $0x78] sm:$0xff]
    %v1122 = vld [vmem:[%s3] sm:$0x1]
    %1123 = vset.pattern.permute.xlu0 0
    %1124 = vperm.xlu0 %1123, %v1106
    %v1125 = vpop.permute.xlu0 %1124
    %1126 = vset.pattern.permute.xlu0 0
    %1127 = vperm.xlu0 %1126, %v1107
    %v1128 = vpop.permute.xlu0 %1127
    %1129 = vset.pattern.permute.xlu0 0
    %1130 = vperm.xlu0 %1129, %v1108
    %v1131 = vpop.permute.xlu0 %1130
    %1132 = vset.pattern.permute.xlu0 0
    %1133 = vperm.xlu0 %1132, %v1109
    %v1134 = vpop.permute.xlu0 %1133
    %1135 = vset.pattern.permute.xlu0 0
    %1136 = vperm.xlu0 %1135, %v1110
    %v1137 = vpop.permute.xlu0 %1136
    %1138 = vset.pattern.permute.xlu0 0
    %1139 = vperm.xlu0 %1138, %v1111
    %v1140 = vpop.permute.xlu0 %1139
    %1141 = vset.pattern.permute.xlu0 0
    %1142 = vperm.xlu0 %1141, %v1112
    %v1143 = vpop.permute.xlu0 %1142
    %1144 = vset.pattern.permute.xlu0 0
    %1145 = vperm.xlu0 %1144, %v1113
    %v1146 = vpop.permute.xlu0 %1145
    %1147 = vset.pattern.permute.xlu0 0
    %1148 = vperm.xlu0 %1147, %v1114
    %v1149 = vpop.permute.xlu0 %1148
    %1150 = vset.pattern.permute.xlu0 0
    %1151 = vperm.xlu0 %1150, %v1115
    %v1152 = vpop.permute.xlu0 %1151
    %1153 = vset.pattern.permute.xlu0 0
    %1154 = vperm.xlu0 %1153, %v1116
    %v1155 = vpop.permute.xlu0 %1154
    %1156 = vset.pattern.permute.xlu0 0
    %1157 = vperm.xlu0 %1156, %v1117
    %v1158 = vpop.permute.xlu0 %1157
    %1159 = vset.pattern.permute.xlu0 0
    %1160 = vperm.xlu0 %1159, %v1118
    %v1161 = vpop.permute.xlu0 %1160
    %1162 = vset.pattern.permute.xlu0 0
    %1163 = vperm.xlu0 %1162, %v1119
    %v1164 = vpop.permute.xlu0 %1163
    %1165 = vset.pattern.permute.xlu0 0
    %1166 = vperm.xlu0 %1165, %v1120
    %v1167 = vpop.permute.xlu0 %1166
    %1168 = vset.pattern.permute.xlu0 0
    %1169 = vperm.xlu0 %1168, %v1121
    %v1170 = vpop.permute.xlu0 %1169
    %v1171 = vlaneseq
    %v1172 = vshrl.u32 %v1171, 7
    %v1173 = vsub.s32 0, %v1172
    %v1174 = vrot.slane %v1122, %v1173
    %vm1175 = vcmp.eq.s32.totalorder %v1125, %v1174
    %vm1176 = vcmp.eq.s32.totalorder %v1128, %v1174
    %vm1177 = vcmp.eq.s32.totalorder %v1131, %v1174
    %vm1178 = vcmp.eq.s32.totalorder %v1134, %v1174
    %vm1179 = vcmp.eq.s32.totalorder %v1137, %v1174
    %vm1180 = vcmp.eq.s32.totalorder %v1140, %v1174
    %vm1181 = vcmp.eq.s32.totalorder %v1143, %v1174
    %vm1182 = vcmp.eq.s32.totalorder %v1146, %v1174
    %vm1183 = vcmp.eq.s32.totalorder %v1149, %v1174
    %vm1184 = vcmp.eq.s32.totalorder %v1152, %v1174
    %vm1185 = vcmp.eq.s32.totalorder %v1155, %v1174
    %vm1186 = vcmp.eq.s32.totalorder %v1158, %v1174
    %vm1187 = vcmp.eq.s32.totalorder %v1161, %v1174
    %vm1188 = vcmp.eq.s32.totalorder %v1164, %v1174
    %vm1189 = vcmp.eq.s32.totalorder %v1167, %v1174
    %vm1190 = vcmp.eq.s32.totalorder %v1170, %v1174
    %s1191 = smul.u32 0, 128
    %v1192 = vlaneseq
    %v1193 = vshrl.u32 %v1192, 7
    %v1194 = vadd.s32 %v1193, 8
    %v1195 = vadd.s32 %v1193, 16
    %v1196 = vadd.s32 %v1193, 24
    %v1197 = vadd.s32 %v1193, 32
    %v1198 = vadd.s32 %v1193, 40
    %v1199 = vadd.s32 %v1193, 48
    %v1200 = vadd.s32 %v1193, 56
    %v1201 = vadd.s32 %v1193, 64
    %v1202 = vadd.s32 %v1193, 72
    %v1203 = vadd.s32 %v1193, 80
    %v1204 = vadd.s32 %v1193, 88
    %v1205 = vadd.s32 %v1193, 96
    %v1206 = vadd.s32 %v1193, 104
    %v1207 = vadd.s32 %v1193, 112
    %v1208 = vadd.s32 %v1193, 120
    %v1209 = vstv %s1191
    %v1210 = vadd.s32 %v1209, %v1193
    %v1211 = vadd.s32 %v1209, %v1194
    %v1212 = vadd.s32 %v1209, %v1195
    %v1213 = vadd.s32 %v1209, %v1196
    %v1214 = vadd.s32 %v1209, %v1197
    %v1215 = vadd.s32 %v1209, %v1198
    %v1216 = vadd.s32 %v1209, %v1199
    %v1217 = vadd.s32 %v1209, %v1200
    %v1218 = vadd.s32 %v1209, %v1201
    %v1219 = vadd.s32 %v1209, %v1202
    %v1220 = vadd.s32 %v1209, %v1203
    %v1221 = vadd.s32 %v1209, %v1204
    %v1222 = vadd.s32 %v1209, %v1205
    %v1223 = vadd.s32 %v1209, %v1206
    %v1224 = vadd.s32 %v1209, %v1207
    %v1225 = vadd.s32 %v1209, %v1208
    %s1226 = smul.u32 0, 128
    %v1227 = vlaneseq
    %v1228 = vand.u32 %v1227, 127
    %v1229 = vstv %s1226
    %v1230 = vadd.s32 %v1229, %v1228
    %vm1231 = vcmp.ne.s32.totalorder %v1210, %v1230
    %vm1232 = vcmp.ne.s32.totalorder %v1211, %v1230
    %vm1233 = vcmp.ne.s32.totalorder %v1212, %v1230
    %vm1234 = vcmp.ne.s32.totalorder %v1213, %v1230
    %vm1235 = vcmp.ne.s32.totalorder %v1214, %v1230
    %vm1236 = vcmp.ne.s32.totalorder %v1215, %v1230
    %vm1237 = vcmp.ne.s32.totalorder %v1216, %v1230
    %vm1238 = vcmp.ne.s32.totalorder %v1217, %v1230
    %vm1239 = vcmp.ne.s32.totalorder %v1218, %v1230
    %vm1240 = vcmp.ne.s32.totalorder %v1219, %v1230
    %vm1241 = vcmp.ne.s32.totalorder %v1220, %v1230
    %vm1242 = vcmp.ne.s32.totalorder %v1221, %v1230
    %vm1243 = vcmp.ne.s32.totalorder %v1222, %v1230
    %vm1244 = vcmp.ne.s32.totalorder %v1223, %v1230
    %vm1245 = vcmp.ne.s32.totalorder %v1224, %v1230
    %vm1246 = vcmp.ne.s32.totalorder %v1225, %v1230
    %vm1247 = vmand %vm1175, %vm1231
    %vm1248 = vmand %vm1176, %vm1232
    %vm1249 = vmand %vm1177, %vm1233
    %vm1250 = vmand %vm1178, %vm1234
    %vm1251 = vmand %vm1179, %vm1235
    %vm1252 = vmand %vm1180, %vm1236
    %vm1253 = vmand %vm1181, %vm1237
    %vm1254 = vmand %vm1182, %vm1238
    %vm1255 = vmand %vm1183, %vm1239
    %vm1256 = vmand %vm1184, %vm1240
    %vm1257 = vmand %vm1185, %vm1241
    %vm1258 = vmand %vm1186, %vm1242
    %vm1259 = vmand %vm1187, %vm1243
    %vm1260 = vmand %vm1188, %vm1244
    %vm1261 = vmand %vm1189, %vm1245
    %vm1262 = vmand %vm1190, %vm1246
    %v1263 = vsel %vm1247, %v1090, 0.0
    %v1264 = vsel %vm1248, %v1091, 0.0
    %v1265 = vsel %vm1249, %v1092, 0.0
    %v1266 = vsel %vm1250, %v1093, 0.0
    %v1267 = vsel %vm1251, %v1094, 0.0
    %v1268 = vsel %vm1252, %v1095, 0.0
    %v1269 = vsel %vm1253, %v1096, 0.0
    %v1270 = vsel %vm1254, %v1097, 0.0
    %v1271 = vsel %vm1255, %v1098, 0.0
    %v1272 = vsel %vm1256, %v1099, 0.0
    %v1273 = vsel %vm1257, %v1100, 0.0
    %v1274 = vsel %vm1258, %v1101, 0.0
    %v1275 = vsel %vm1259, %v1102, 0.0
    %v1276 = vsel %vm1260, %v1103, 0.0
    %v1277 = vsel %vm1261, %v1104, 0.0
    %v1278 = vsel %vm1262, %v1105, 0.0
    %1279 = vadd.xlane.f32.xlu0 %v1263
    %v1280 = vpop.xlane.xlu0 %1279
    %1281 = vadd.xlane.f32.xlu0 %v1264
    %v1282 = vpop.xlane.xlu0 %1281
    %1283 = vadd.xlane.f32.xlu0 %v1265
    %v1284 = vpop.xlane.xlu0 %1283
    %1285 = vadd.xlane.f32.xlu0 %v1266
    %v1286 = vpop.xlane.xlu0 %1285
    %1287 = vadd.xlane.f32.xlu0 %v1267
    %v1288 = vpop.xlane.xlu0 %1287
    %1289 = vadd.xlane.f32.xlu0 %v1268
    %v1290 = vpop.xlane.xlu0 %1289
    %1291 = vadd.xlane.f32.xlu0 %v1269
    %v1292 = vpop.xlane.xlu0 %1291
    %1293 = vadd.xlane.f32.xlu0 %v1270
    %v1294 = vpop.xlane.xlu0 %1293
    %1295 = vadd.xlane.f32.xlu0 %v1271
    %v1296 = vpop.xlane.xlu0 %1295
    %1297 = vadd.xlane.f32.xlu0 %v1272
    %v1298 = vpop.xlane.xlu0 %1297
    %1299 = vadd.xlane.f32.xlu0 %v1273
    %v1300 = vpop.xlane.xlu0 %1299
    %1301 = vadd.xlane.f32.xlu0 %v1274
    %v1302 = vpop.xlane.xlu0 %1301
    %1303 = vadd.xlane.f32.xlu0 %v1275
    %v1304 = vpop.xlane.xlu0 %1303
    %1305 = vadd.xlane.f32.xlu0 %v1276
    %v1306 = vpop.xlane.xlu0 %1305
    %1307 = vadd.xlane.f32.xlu0 %v1277
    %v1308 = vpop.xlane.xlu0 %1307
    %1309 = vadd.xlane.f32.xlu0 %v1278
    %v1310 = vpop.xlane.xlu0 %1309
    %p1311 = scmp.eq.s32.totalorder 0, 0
    // Predicated region
    $region26: #{tpu_custom_call.1} parent=1 // pred_check
      %p1312 = pneg %p1311
    $region27: #{tpu_custom_call.1} parent=1 // pred_check_branch
      %1314 = sbr.rel (%p1312) target = $region29
    $region28: #{tpu_custom_call.1} parent=1 // pred_region
      %vm1315 = vcmask 7168
      %1316 = vst.msk [vmem:[%s8] sm:$0xff] %vm1315, 0.0
      %1317 = vst.msk [vmem:[%s8 + $0x8] sm:$0xff] %vm1315, 0.0
      %1318 = vst.msk [vmem:[%s8 + $0x10] sm:$0xff] %vm1315, 0.0
      %1319 = vst.msk [vmem:[%s8 + $0x18] sm:$0xff] %vm1315, 0.0
      %1320 = vst.msk [vmem:[%s8 + $0x20] sm:$0xff] %vm1315, 0.0
      %1321 = vst.msk [vmem:[%s8 + $0x28] sm:$0xff] %vm1315, 0.0
      %1322 = vst.msk [vmem:[%s8 + $0x30] sm:$0xff] %vm1315, 0.0
      %1323 = vst.msk [vmem:[%s8 + $0x38] sm:$0xff] %vm1315, 0.0
      %1324 = vst.msk [vmem:[%s8 + $0x40] sm:$0xff] %vm1315, 0.0
      %1325 = vst.msk [vmem:[%s8 + $0x48] sm:$0xff] %vm1315, 0.0
      %1326 = vst.msk [vmem:[%s8 + $0x50] sm:$0xff] %vm1315, 0.0
      %1327 = vst.msk [vmem:[%s8 + $0x58] sm:$0xff] %vm1315, 0.0
      %1328 = vst.msk [vmem:[%s8 + $0x60] sm:$0xff] %vm1315, 0.0
      %1329 = vst.msk [vmem:[%s8 + $0x68] sm:$0xff] %vm1315, 0.0
      %1330 = vst.msk [vmem:[%s8 + $0x70] sm:$0xff] %vm1315, 0.0
      %1331 = vst.msk [vmem:[%s8 + $0x78] sm:$0xff] %vm1315, 0.0
    $region29: #{tpu_custom_call.1} parent=1 // pred_fallthru
      _
    %v1332 = vld [vmem:[%s8] sm:$0xff]
    %v1333 = vld [vmem:[%s8 + $0x8] sm:$0xff]
    %v1334 = vld [vmem:[%s8 + $0x10] sm:$0xff]
    %v1335 = vld [vmem:[%s8 + $0x18] sm:$0xff]
    %v1336 = vld [vmem:[%s8 + $0x20] sm:$0xff]
    %v1337 = vld [vmem:[%s8 + $0x28] sm:$0xff]
    %v1338 = vld [vmem:[%s8 + $0x30] sm:$0xff]
    %v1339 = vld [vmem:[%s8 + $0x38] sm:$0xff]
    %v1340 = vld [vmem:[%s8 + $0x40] sm:$0xff]
    %v1341 = vld [vmem:[%s8 + $0x48] sm:$0xff]
    %v1342 = vld [vmem:[%s8 + $0x50] sm:$0xff]
    %v1343 = vld [vmem:[%s8 + $0x58] sm:$0xff]
    %v1344 = vld [vmem:[%s8 + $0x60] sm:$0xff]
    %v1345 = vld [vmem:[%s8 + $0x68] sm:$0xff]
    %v1346 = vld [vmem:[%s8 + $0x70] sm:$0xff]
    %v1347 = vld [vmem:[%s8 + $0x78] sm:$0xff]
    %v1348 = vadd.f32 %v1332, %v1280
    %v1349 = vadd.f32 %v1333, %v1282
    %v1350 = vadd.f32 %v1334, %v1284
    %v1351 = vadd.f32 %v1335, %v1286
    %v1352 = vadd.f32 %v1336, %v1288
    %v1353 = vadd.f32 %v1337, %v1290
    %v1354 = vadd.f32 %v1338, %v1292
    %v1355 = vadd.f32 %v1339, %v1294
    %v1356 = vadd.f32 %v1340, %v1296
    %v1357 = vadd.f32 %v1341, %v1298
    %v1358 = vadd.f32 %v1342, %v1300
    %v1359 = vadd.f32 %v1343, %v1302
    %v1360 = vadd.f32 %v1344, %v1304
    %v1361 = vadd.f32 %v1345, %v1306
    %v1362 = vadd.f32 %v1346, %v1308
    %v1363 = vadd.f32 %v1347, %v1310
    %vm1364 = vcmask 7168
    %1365 = vst.msk [vmem:[%s8] sm:$0xff] %vm1364, %v1348
    %1366 = vst.msk [vmem:[%s8 + $0x8] sm:$0xff] %vm1364, %v1349
    %1367 = vst.msk [vmem:[%s8 + $0x10] sm:$0xff] %vm1364, %v1350
    %1368 = vst.msk [vmem:[%s8 + $0x18] sm:$0xff] %vm1364, %v1351
    %1369 = vst.msk [vmem:[%s8 + $0x20] sm:$0xff] %vm1364, %v1352
    %1370 = vst.msk [vmem:[%s8 + $0x28] sm:$0xff] %vm1364, %v1353
    %1371 = vst.msk [vmem:[%s8 + $0x30] sm:$0xff] %vm1364, %v1354
    %1372 = vst.msk [vmem:[%s8 + $0x38] sm:$0xff] %vm1364, %v1355
    %1373 = vst.msk [vmem:[%s8 + $0x40] sm:$0xff] %vm1364, %v1356
    %1374 = vst.msk [vmem:[%s8 + $0x48] sm:$0xff] %vm1364, %v1357
    %1375 = vst.msk [vmem:[%s8 + $0x50] sm:$0xff] %vm1364, %v1358
    %1376 = vst.msk [vmem:[%s8 + $0x58] sm:$0xff] %vm1364, %v1359
    %1377 = vst.msk [vmem:[%s8 + $0x60] sm:$0xff] %vm1364, %v1360
    %1378 = vst.msk [vmem:[%s8 + $0x68] sm:$0xff] %vm1364, %v1361
    %1379 = vst.msk [vmem:[%s8 + $0x70] sm:$0xff] %vm1364, %v1362
    %1380 = vst.msk [vmem:[%s8 + $0x78] sm:$0xff] %vm1364, %v1363
    // Predicated region
    $region30: #{tpu_custom_call.1} parent=1 // pred_check
      _
    $region31: #{tpu_custom_call.1} parent=1 // pred_check_branch
      %1382 = sbr.rel (0) target = $region33
    $region32: #{tpu_custom_call.1} parent=1 // pred_region
      %s1384 = ssub.s32 2048, 2048
      %1385 = vsyncadd [#allocation3], %s1384
      %s1386 = sshll.u32 [#allocation2], 4
      %s1387 = int_to_ptr.vmem [resolvable:$true] %s1386
      %1392 = dma.vmem_to_hbm [thread:$0]  %s1387, 2048, %s6, [#allocation3], 128, 128, 8
    $region33: #{tpu_custom_call.1} parent=1 // pred_fallthru
      _
    // Predicated region
    $region34: #{tpu_custom_call.1} parent=1 // pred_check
      _
    $region35: #{tpu_custom_call.1} parent=1 // pred_check_branch
      %1394 = sbr.rel (0) target = $region37
    $region36: #{tpu_custom_call.1} parent=1 // pred_region
      %s1396 = ssub.s32 2048, 2048
      %1397 = vsyncadd [#allocation5], %s1396
      %s1398 = sshll.u32 [#allocation4], 4
      %s1399 = int_to_ptr.vmem [resolvable:$true] %s1398
      %1404 = dma.vmem_to_hbm [thread:$0]  %s1399, 2048, %s7, [#allocation5], 128, 128, 8
    $region37: #{tpu_custom_call.1} parent=1 // pred_fallthru
      _
    // Predicated region
    $region38: #{tpu_custom_call.1} parent=1 // pred_check
      _
    $region39: #{tpu_custom_call.1} parent=1 // pred_check_branch
      %1406 = sbr.rel (0) target = $region41
    $region40: #{tpu_custom_call.1} parent=1 // pred_region
      _
    $region41: #{tpu_custom_call.1} parent=1 // pred_fallthru
      _
    // Predicated region
    $region42: #{tpu_custom_call.1} parent=1 // pred_check
      _
    $region43: #{tpu_custom_call.1} parent=1 // pred_check_branch
      %1408 = sbr.rel (0) target = $region45
    $region44: #{tpu_custom_call.1} parent=1 // pred_region
      %1409 = dma.done [#allocation3], 2048
    $region45: #{tpu_custom_call.1} parent=1 // pred_fallthru
      _
    // Predicated region
    $region46: #{tpu_custom_call.1} parent=1 // pred_check
      _
    $region47: #{tpu_custom_call.1} parent=1 // pred_check_branch
      %1411 = sbr.rel (0) target = $region49
    $region48: #{tpu_custom_call.1} parent=1 // pred_region
      %1412 = dma.done [#allocation5], 2048
    $region49: #{tpu_custom_call.1} parent=1 // pred_fallthru
      _
    // Predicated region
    $region50: #{tpu_custom_call.1} parent=1 // pred_check
      _
    $region51: #{tpu_custom_call.1} parent=1 // pred_check_branch
      %1414 = sbr.rel (0) target = $region53
    $region52: #{tpu_custom_call.1} parent=1 // pred_region
      _
    $region53: #{tpu_custom_call.1} parent=1 // pred_fallthru
      _
    %1415 = vsyncpa [#allocation3], 1
    %1416 = vsyncpa [#allocation5], 1

</llo_original>
